<compile_context>
chip_gen: v7x
topology: tpu7x:2x2x1
jax: 0.10.0
libtpu: 0.0.40
codegen_flags: <defaults>
</compile_context>

<pallas_src>
import functools

import jax
import jax.numpy as jnp
from jax.experimental import pallas as pl
from jax.experimental.pallas import tpu as pltpu

EPS = 1e-5
LANE = 128


def _round_up(x, m):
    return (x + m - 1) // m * m


def _cpad(c):
    # HBM-facing / matmul channel padding: pad to a lane multiple only when the
    # real channel count is already >= 128; tiny channels pad to 16 (legal
    # because every BlockSpec block equals the full array dims).
    return _round_up(c, LANE) if c >= LANE else _round_up(c, 16)


def _pad_axis(a, axis, size):
    pad = [(0, 0)] * a.ndim
    pad[axis] = (0, size - a.shape[axis])
    return jnp.pad(a, pad)


def _vmem_limit_bytes():
    # Generation-aware VMEM budget (v7x has 64 MiB physical; v5e/v6e 128 MiB).
    try:
        cap = getattr(pltpu.get_tpu_info(), "vmem_capacity_bytes", None)
        if cap:
            return int(min(cap * 3 // 4, 100 * 1024 * 1024))
    except Exception:
        pass
    return 48 * 1024 * 1024


# ----------------------------------------------------------------------------
# Fused Pallas kernel: per batch image n, computes the whole ConvBlock2D.
# ----------------------------------------------------------------------------
def _conv_block_kernel(xs_ref, mask_ref, wrp_ref, w3_ref, wi_ref,
                       b1_ref, bp_ref, b3_ref, bi_ref,
                       o_ref, slab_ref, *, WROW, F1P):
    # xs_ref  : (1, SLABM, CINP) bf16 -- strided x laid out on the padded slab
    #                                    grid (row stride WROW), flat rows
    # mask_ref: (SLABM, 1)  f32       -- 1.0 on interior pixels, 0.0 on halo
    # wrp_ref : (CINP, F1P+F3P) bf16  -- merged 1x1 reduce | 1x1 proj weights
    # w3_ref  : (3, 3, F1P, F2P) bf16 -- HWIO 3x3 weights (BN scale folded)
    # wi_ref  : (F2P, F3P) bf16       -- 1x1 increase weights (BN scale folded)
    # b*_ref  : (1, C) f32 folded BN biases
    # slab_ref: (3, SLABD, F1P) bf16  -- dx-pre-shifted zero-padded slabs
    M2 = o_ref.shape[1]            # Ho * WROW (width-overcomputed output rows)
    SLABD = slab_ref.shape[1]      # (Ho + 2) * WROW
    F3P = wi_ref.shape[1]

    xs2d = xs_ref[0]                                           # (SLABM, CINP)

    # ---- stage 1: one merged matmul = 1x1 reduce + 1x1 proj ----------------
    h = jnp.dot(xs2d, wrp_ref[...], preferred_element_type=jnp.float32)
    h1 = jnp.maximum(h[:, :F1P] + b1_ref[...], 0.0) * mask_ref[...]
    proj = h[:, F1P:] + bp_ref[...]
    proj = proj[WROW + 1:WROW + 1 + M2, :]     # slab grid -> output grid rows

    # ---- three dx-pre-shifted bf16 slabs: cast once per dx; all nine tap
    #      reads below are tile-aligned views (no per-tap relayout / cast) ----
    for dx in range(3):
        slab_ref[dx] = h1[dx:dx + SLABD, :].astype(jnp.bfloat16)

    # ---- stage 2: 3x3 conv as 9 tap matmuls accumulated in SSA f32 ---------
    acc = None
    for dy in range(3):
        row = dy * WROW                         # multiple of 16 -> aligned
        for dx in range(3):
            part = jnp.dot(slab_ref[dx, row:row + M2, :], w3_ref[dy, dx],
                           preferred_element_type=jnp.float32)
            acc = part if acc is None else acc + part
    h2 = jnp.maximum(acc + b3_ref[...], 0.0)

    # ---- stage 3: 1x1 increase + residual add + ReLU ------------------------
    y = jnp.dot(h2.astype(jnp.bfloat16), wi_ref[...],
                preferred_element_type=jnp.float32)
    y = jnp.maximum(y + bi_ref[...] + proj, 0.0)
    o_ref[...] = y.reshape(1, M2, F3P).astype(o_ref.dtype)


# ----------------------------------------------------------------------------
# Parameter preparation: PyTorch layouts -> padded bf16 matmul weights with the
# inference-mode BN scale folded in; BN bias kept as per-channel f32 vectors.
# ----------------------------------------------------------------------------
def _fold_bn(bn):
    gamma, beta, mean, var = bn
    scale = gamma * jax.lax.rsqrt(var + EPS)
    return scale, beta - mean * scale


def _prepare(params):
    f1, cin = params["w_reduce"].shape[:2]
    f3 = params["w_proj"].shape[0]
    f2 = params["w_3x3"].shape[0]
    CINP, F1P, F2P, F3P = (_cpad(c) for c in (cin, f1, f2, f3))

    s1, b1 = _fold_bn(params["bn_reduce"])
    sp, bp = _fold_bn(params["bn_proj"])
    s3, b3 = _fold_bn(params["bn_3x3"])
    si, bi = _fold_bn(params["bn_inc"])

    def mat_1x1(w_oihw, scale, rows, cols):      # (O,I,1,1) -> scaled (I_p,O_p)
        m = jnp.transpose(w_oihw[:, :, 0, 0], (1, 0)) * scale[None, :]
        return _pad_axis(_pad_axis(m, 0, rows), 1, cols)

    w1 = mat_1x1(params["w_reduce"], s1, CINP, F1P)
    wp = mat_1x1(params["w_proj"], sp, CINP, F3P)
    wrp = jnp.concatenate([w1, wp], axis=1).astype(jnp.bfloat16)
    wi = mat_1x1(params["w_inc"], si, F2P, F3P).astype(jnp.bfloat16)

    w3 = jnp.transpose(params["w_3x3"], (2, 3, 1, 0)) * s3[None, None, None, :]
    w3 = _pad_axis(_pad_axis(w3, 2, F1P), 3, F2P).astype(jnp.bfloat16)

    def vec(b, cp):
        return _pad_axis(b, 0, cp).reshape(1, cp).astype(jnp.float32)

    return dict(wrp=wrp, w3=w3, wi=wi,
                b1=vec(b1, F1P), bp=vec(bp, F3P),
                b3=vec(b3, F2P), bi=vec(bi, F3P),
                dims=(cin, f1, f2, f3, CINP, F1P, F2P, F3P))


# ----------------------------------------------------------------------------
# ConvBlock2D forward (NCHW in / NCHW out, matching the PyTorch module)
# ----------------------------------------------------------------------------
def conv_block_2d(x_nchw, params, stride=(2, 2)):
    N = x_nchw.shape[0]
    sh, sw = stride
    prm = _prepare(params)
    cin, f1, f2, f3, CINP, F1P, F2P, F3P = prm["dims"]
    NTOT = F1P + F3P

    # A stride-s 1x1 conv only reads every s-th pixel, so the subsample is
    # folded into the single wrapper-side layout pass (NCHW->NHWC, spatial
    # zero-pad onto the W-padded slab grid, channel pad, flatten, bf16).
    xs = jnp.transpose(x_nchw[:, :, ::sh, ::sw], (0, 2, 3, 1))
    Ho, Wo = xs.shape[1], xs.shape[2]
    WROW = _round_up(Wo + 2, 16)           # padded row stride (bf16-tile aligned)
    SLABD = (Ho + 2) * WROW                # rows of each pre-shifted slab
    SLABM = (Ho + 3) * WROW                # rows of the stage-1 compute grid
    M2 = Ho * WROW                         # output rows (width-overcomputed)

    xs = jnp.pad(xs, ((0, 0), (1, 2), (1, WROW - Wo - 1), (0, CINP - cin)))
    xs = xs.reshape(N, SLABM, CINP).astype(jnp.bfloat16)

    idx = jnp.arange(SLABM, dtype=jnp.int32)
    r, c = idx // WROW, idx % WROW
    mask = (((r >= 1) & (r <= Ho) & (c >= 1) & (c <= Wo))
            .astype(jnp.float32).reshape(SLABM, 1))

    flops = 2 * N * (SLABM * CINP * NTOT + 9 * M2 * F1P * F2P + M2 * F2P * F3P)
    bytes_accessed = (xs.size * 2 + mask.size * 4 + N * M2 * F3P * 4
                      + (prm["wrp"].size + prm["w3"].size + prm["wi"].size) * 2)

    kernel = functools.partial(_conv_block_kernel, WROW=WROW, F1P=F1P)
    out = pl.pallas_call(
        kernel,
        out_shape=jax.ShapeDtypeStruct((N, M2, F3P), jnp.float32),
        grid=(N,),
        in_specs=[
            pl.BlockSpec((1, SLABM, CINP), lambda n: (n, 0, 0)),
            pl.BlockSpec((SLABM, 1), lambda n: (0, 0)),
            pl.BlockSpec((CINP, NTOT), lambda n: (0, 0)),
            pl.BlockSpec((3, 3, F1P, F2P), lambda n: (0, 0, 0, 0)),
            pl.BlockSpec((F2P, F3P), lambda n: (0, 0)),
            pl.BlockSpec((1, F1P), lambda n: (0, 0)),
            pl.BlockSpec((1, F3P), lambda n: (0, 0)),
            pl.BlockSpec((1, F2P), lambda n: (0, 0)),
            pl.BlockSpec((1, F3P), lambda n: (0, 0)),
        ],
        out_specs=pl.BlockSpec((1, M2, F3P), lambda n: (n, 0, 0)),
        scratch_shapes=[pltpu.VMEM((3, SLABD, F1P), jnp.bfloat16)],
        compiler_params=pltpu.CompilerParams(
            dimension_semantics=("parallel",),
            vmem_limit_bytes=_vmem_limit_bytes()),
        cost_estimate=pl.CostEstimate(flops=int(flops), transcendentals=0,
                                      bytes_accessed=int(bytes_accessed)),
    )(xs, mask, prm["wrp"], prm["w3"], prm["wi"],
      prm["b1"], prm["bp"], prm["b3"], prm["bi"])

    # drop width-overcompute columns and channel padding, back to NCHW
    out = out.reshape(N, Ho, WROW, F3P)[:, :, :Wo, :f3]
    return jnp.transpose(out, (0, 3, 1, 2))


# ----------------------------------------------------------------------------
# Pure-JAX f32 reference (PyTorch eval() semantics) for correctness check
# ----------------------------------------------------------------------------
def _ref_conv(x, w, stride):
    return jax.lax.conv_general_dilated(
        x, w, window_strides=stride, padding="VALID",
        dimension_numbers=("NCHW", "OIHW", "NCHW"))


def _ref_bn(x, bn):
    gamma, beta, mean, var = bn
    inv = gamma / jnp.sqrt(var + EPS)
    return ((x - mean[None, :, None, None]) * inv[None, :, None, None]
            + beta[None, :, None, None])


def reference_block(x, p, stride):
    x1 = _ref_conv(x, p["w_reduce"], stride)
    x1 = jax.nn.relu(_ref_bn(x1, p["bn_reduce"]))
    x1 = jnp.pad(x1, ((0, 0), (0, 0), (1, 1), (1, 1)))
    x1 = _ref_conv(x1, p["w_3x3"], (1, 1))
    x1 = jax.nn.relu(_ref_bn(x1, p["bn_3x3"]))
    x1 = _ref_conv(x1, p["w_inc"], (1, 1))
    x1 = _ref_bn(x1, p["bn_inc"])
    x2 = _ref_bn(_ref_conv(x, p["w_proj"], stride), p["bn_proj"])
    return jax.nn.relu(x1 + x2)


# ----------------------------------------------------------------------------
# Deterministic parameter construction (PyTorch Conv2d / BatchNorm2d layouts)
# ----------------------------------------------------------------------------
def make_params(key, c_in, f1, f2, f3):
    ks = jax.random.split(key, 8)

    def bn(k, c):
        k1, k2, k3, k4 = jax.random.split(k, 4)
        gamma = 1.0 + 0.1 * jax.random.normal(k1, (c,), jnp.float32)
        beta = 0.1 * jax.random.normal(k2, (c,), jnp.float32)
        mean = 0.1 * jax.random.normal(k3, (c,), jnp.float32)
        var = jax.random.uniform(k4, (c,), jnp.float32, 0.5, 1.5)
        return (gamma, beta, mean, var)

    return {
        # PyTorch Conv2d weight layouts (O, I, kH, kW), bias=False
        "w_reduce": 0.1 * jax.random.normal(ks[0], (f1, c_in, 1, 1), jnp.float32),
        "w_proj":   0.1 * jax.random.normal(ks[1], (f3, c_in, 1, 1), jnp.float32),
        "w_3x3":    0.1 * jax.random.normal(ks[2], (f2, f1, 3, 3), jnp.float32),
        "w_inc":    0.1 * jax.random.normal(ks[3], (f3, f2, 1, 1), jnp.float32),
        "bn_reduce": bn(ks[4], f1),
        "bn_proj":   bn(ks[5], f3),
        "bn_3x3":    bn(ks[6], f2),
        "bn_inc":    bn(ks[7], f3),
    }


if __name__ == "__main__":
    key = jax.random.PRNGKey(0)
    k_x, k_p = jax.random.split(key)

    # Small shapes consistent with the module: NCHW input, filters (8, 8, 16)
    N, C_in, H, W = 2, 4, 16, 16
    f1, f2, f3 = 8, 8, 16

    x = jax.random.normal(k_x, (N, C_in, H, W), jnp.float32)
    params = make_params(k_p, C_in, f1, f2, f3)

    fwd = jax.jit(functools.partial(conv_block_2d, stride=(2, 2)))
    out = jax.block_until_ready(fwd(x, params))

    assert out.shape == (N, f3, H // 2, W // 2), out.shape
    assert bool(jnp.all(out >= 0.0))  # final ReLU

    # numerical check vs pure-JAX f32 reference (bf16 matmuls, f32 accumulate)
    ref = reference_block(x, params, (2, 2))
    err = float(jnp.max(jnp.abs(out - ref)))
    assert err < 5e-2, f"max abs error vs reference: {err}"

    print("KERNEL_OK")
</pallas_src>

<mosaic_0001>
module attributes {stable_mosaic.version = 11 : i64} {
  func.func @_conv_block_kernel(%arg0: i32, %arg1: memref<1x176x16xbf16, #tpu.memory_space<vmem>>, %arg2: memref<176x1xf32, #tpu.memory_space<vmem>>, %arg3: memref<16x32xbf16, #tpu.memory_space<vmem>>, %arg4: memref<3x3x16x16xbf16, #tpu.memory_space<vmem>>, %arg5: memref<16x16xbf16, #tpu.memory_space<vmem>>, %arg6: memref<1x16xf32, #tpu.memory_space<vmem>>, %arg7: memref<1x16xf32, #tpu.memory_space<vmem>>, %arg8: memref<1x16xf32, #tpu.memory_space<vmem>>, %arg9: memref<1x16xf32, #tpu.memory_space<vmem>>, %arg10: memref<1x128x16xf32, #tpu.memory_space<vmem>>, %arg11: memref<3x160x16xbf16, #tpu.memory_space<vmem>>) attributes {dimension_semantics = [#tpu.dimension_semantics<parallel>], iteration_bounds = array<i64: 2>, scalar_prefetch = 0 : i64, scratch_operands = 1 : i64, tpu.core_type = #tpu.core_type<tc>, window_params = [{transform_indices = @transform_0, window_bounds = array<i64: 1, 176, 16>}, {pipeline_mode = #tpu.pipeline_mode<synchronous>, transform_indices = @transform_1, window_bounds = array<i64: 176, 1>}, {pipeline_mode = #tpu.pipeline_mode<synchronous>, transform_indices = @transform_2, window_bounds = array<i64: 16, 32>}, {pipeline_mode = #tpu.pipeline_mode<synchronous>, transform_indices = @transform_3, window_bounds = array<i64: 3, 3, 16, 16>}, {pipeline_mode = #tpu.pipeline_mode<synchronous>, transform_indices = @transform_4, window_bounds = array<i64: 16, 16>}, {pipeline_mode = #tpu.pipeline_mode<synchronous>, transform_indices = @transform_5, window_bounds = array<i64: 1, 16>}, {pipeline_mode = #tpu.pipeline_mode<synchronous>, transform_indices = @transform_6, window_bounds = array<i64: 1, 16>}, {pipeline_mode = #tpu.pipeline_mode<synchronous>, transform_indices = @transform_7, window_bounds = array<i64: 1, 16>}, {pipeline_mode = #tpu.pipeline_mode<synchronous>, transform_indices = @transform_8, window_bounds = array<i64: 1, 16>}, {transform_indices = @transform_9, window_bounds = array<i64: 1, 128, 16>}]} {
    %c0 = arith.constant 0 : index
    %c0_0 = arith.constant 0 : index
    %c0_1 = arith.constant 0 : index
    %0 = vector.load %arg1[%c0, %c0_0, %c0_1] : memref<1x176x16xbf16, #tpu.memory_space<vmem>>, vector<1x176x16xbf16>
    %1 = vector.shape_cast %0 : vector<1x176x16xbf16> to vector<176x16xbf16>
    %c0_2 = arith.constant 0 : index
    %c0_3 = arith.constant 0 : index
    %2 = vector.load %arg3[%c0_2, %c0_3] : memref<16x32xbf16, #tpu.memory_space<vmem>>, vector<16x32xbf16>
    %cst = arith.constant dense<0.000000e+00> : vector<176x32xf32>
    %3 = tpu.matmul %1, %2, %cst {dimension_numbers = #tpu.dot_dimension_numbers<[1], [0], [0], [1], [0, 0, 1, 1], [], []>} : vector<176x16xbf16>, vector<16x32xbf16>, vector<176x32xf32> -> vector<176x32xf32>
    %4 = vector.extract_strided_slice %3 {offsets = [0, 0], sizes = [176, 16], strides = [1, 1]} : vector<176x32xf32> to vector<176x16xf32>
    %c0_4 = arith.constant 0 : index
    %c0_5 = arith.constant 0 : index
    %5 = vector.load %arg6[%c0_4, %c0_5] : memref<1x16xf32, #tpu.memory_space<vmem>>, vector<1x16xf32>
    %6 = vector.broadcast %5 : vector<1x16xf32> to vector<176x16xf32>
    %7 = arith.addf %4, %6 : vector<176x16xf32>
    %cst_6 = arith.constant 0.000000e+00 : f32
    %8 = vector.broadcast %cst_6 : f32 to vector<176x16xf32>
    %9 = arith.maximumf %7, %8 : vector<176x16xf32>
    %c0_7 = arith.constant 0 : index
    %c0_8 = arith.constant 0 : index
    %10 = vector.load %arg2[%c0_7, %c0_8] : memref<176x1xf32, #tpu.memory_space<vmem>>, vector<176x1xf32>
    %11 = vector.broadcast %10 : vector<176x1xf32> to vector<176x16xf32>
    %12 = arith.mulf %9, %11 : vector<176x16xf32>
    %13 = vector.extract_strided_slice %3 {offsets = [0, 16], sizes = [176, 16], strides = [1, 1]} : vector<176x32xf32> to vector<176x16xf32>
    %c0_9 = arith.constant 0 : index
    %c0_10 = arith.constant 0 : index
    %14 = vector.load %arg7[%c0_9, %c0_10] : memref<1x16xf32, #tpu.memory_space<vmem>>, vector<1x16xf32>
    %15 = vector.broadcast %14 : vector<1x16xf32> to vector<176x16xf32>
    %16 = arith.addf %13, %15 : vector<176x16xf32>
    %17 = vector.extract_strided_slice %16 {offsets = [17, 0], sizes = [128, 16], strides = [1, 1]} : vector<176x16xf32> to vector<128x16xf32>
    %18 = vector.extract_strided_slice %12 {offsets = [0, 0], sizes = [160, 16], strides = [1, 1]} : vector<176x16xf32> to vector<160x16xf32>
    %19 = arith.truncf %18 : vector<160x16xf32> to vector<160x16xbf16>
    %c0_11 = arith.constant 0 : index
    %c0_12 = arith.constant 0 : index
    %c0_13 = arith.constant 0 : index
    %20 = vector.load %arg11[%c0_11, %c0_12, %c0_13] : memref<3x160x16xbf16, #tpu.memory_space<vmem>>, vector<1x160x16xbf16>
    %21 = vector.shape_cast %20 : vector<1x160x16xbf16> to vector<160x16xbf16>
    %22 = vector.shape_cast %19 : vector<160x16xbf16> to vector<1x160x16xbf16>
    tpu.vector_store %arg11[%c0_11, %c0_12, %c0_13], %22 {strides = array<i32>} : memref<3x160x16xbf16, #tpu.memory_space<vmem>>, vector<1x160x16xbf16>,
    %23 = vector.extract_strided_slice %12 {offsets = [1, 0], sizes = [160, 16], strides = [1, 1]} : vector<176x16xf32> to vector<160x16xf32>
    %24 = arith.truncf %23 : vector<160x16xf32> to vector<160x16xbf16>
    %c1 = arith.constant 1 : index
    %c0_14 = arith.constant 0 : index
    %c0_15 = arith.constant 0 : index
    %25 = vector.load %arg11[%c1, %c0_14, %c0_15] : memref<3x160x16xbf16, #tpu.memory_space<vmem>>, vector<1x160x16xbf16>
    %26 = vector.shape_cast %25 : vector<1x160x16xbf16> to vector<160x16xbf16>
    %27 = vector.shape_cast %24 : vector<160x16xbf16> to vector<1x160x16xbf16>
    tpu.vector_store %arg11[%c1, %c0_14, %c0_15], %27 {strides = array<i32>} : memref<3x160x16xbf16, #tpu.memory_space<vmem>>, vector<1x160x16xbf16>,
    %28 = vector.extract_strided_slice %12 {offsets = [2, 0], sizes = [160, 16], strides = [1, 1]} : vector<176x16xf32> to vector<160x16xf32>
    %29 = arith.truncf %28 : vector<160x16xf32> to vector<160x16xbf16>
    %c2 = arith.constant 2 : index
    %c0_16 = arith.constant 0 : index
    %c0_17 = arith.constant 0 : index
    %30 = vector.load %arg11[%c2, %c0_16, %c0_17] : memref<3x160x16xbf16, #tpu.memory_space<vmem>>, vector<1x160x16xbf16>
    %31 = vector.shape_cast %30 : vector<1x160x16xbf16> to vector<160x16xbf16>
    %32 = vector.shape_cast %29 : vector<160x16xbf16> to vector<1x160x16xbf16>
    tpu.vector_store %arg11[%c2, %c0_16, %c0_17], %32 {strides = array<i32>} : memref<3x160x16xbf16, #tpu.memory_space<vmem>>, vector<1x160x16xbf16>,
    %c0_18 = arith.constant 0 : index
    %c0_19 = arith.constant 0 : index
    %c0_20 = arith.constant 0 : index
    %33 = vector.load %arg11[%c0_18, %c0_19, %c0_20] : memref<3x160x16xbf16, #tpu.memory_space<vmem>>, vector<1x128x16xbf16>
    %34 = vector.shape_cast %33 : vector<1x128x16xbf16> to vector<128x16xbf16>
    %c0_21 = arith.constant 0 : index
    %c0_22 = arith.constant 0 : index
    %c0_23 = arith.constant 0 : index
    %c0_24 = arith.constant 0 : index
    %35 = vector.load %arg4[%c0_21, %c0_22, %c0_23, %c0_24] : memref<3x3x16x16xbf16, #tpu.memory_space<vmem>>, vector<1x1x16x16xbf16>
    %36 = vector.shape_cast %35 : vector<1x1x16x16xbf16> to vector<16x16xbf16>
    %cst_25 = arith.constant dense<0.000000e+00> : vector<128x16xf32>
    %37 = tpu.matmul %34, %36, %cst_25 {dimension_numbers = #tpu.dot_dimension_numbers<[1], [0], [0], [1], [0, 0, 1, 1], [], []>} : vector<128x16xbf16>, vector<16x16xbf16>, vector<128x16xf32> -> vector<128x16xf32>
    %c1_26 = arith.constant 1 : index
    %c0_27 = arith.constant 0 : index
    %c0_28 = arith.constant 0 : index
    %38 = vector.load %arg11[%c1_26, %c0_27, %c0_28] : memref<3x160x16xbf16, #tpu.memory_space<vmem>>, vector<1x128x16xbf16>
    %39 = vector.shape_cast %38 : vector<1x128x16xbf16> to vector<128x16xbf16>
    %c0_29 = arith.constant 0 : index
    %c1_30 = arith.constant 1 : index
    %c0_31 = arith.constant 0 : index
    %c0_32 = arith.constant 0 : index
    %40 = vector.load %arg4[%c0_29, %c1_30, %c0_31, %c0_32] : memref<3x3x16x16xbf16, #tpu.memory_space<vmem>>, vector<1x1x16x16xbf16>
    %41 = vector.shape_cast %40 : vector<1x1x16x16xbf16> to vector<16x16xbf16>
    %cst_33 = arith.constant dense<0.000000e+00> : vector<128x16xf32>
    %42 = tpu.matmul %39, %41, %cst_33 {dimension_numbers = #tpu.dot_dimension_numbers<[1], [0], [0], [1], [0, 0, 1, 1], [], []>} : vector<128x16xbf16>, vector<16x16xbf16>, vector<128x16xf32> -> vector<128x16xf32>
    %43 = arith.addf %37, %42 : vector<128x16xf32>
    %c2_34 = arith.constant 2 : index
    %c0_35 = arith.constant 0 : index
    %c0_36 = arith.constant 0 : index
    %44 = vector.load %arg11[%c2_34, %c0_35, %c0_36] : memref<3x160x16xbf16, #tpu.memory_space<vmem>>, vector<1x128x16xbf16>
    %45 = vector.shape_cast %44 : vector<1x128x16xbf16> to vector<128x16xbf16>
    %c0_37 = arith.constant 0 : index
    %c2_38 = arith.constant 2 : index
    %c0_39 = arith.constant 0 : index
    %c0_40 = arith.constant 0 : index
    %46 = vector.load %arg4[%c0_37, %c2_38, %c0_39, %c0_40] : memref<3x3x16x16xbf16, #tpu.memory_space<vmem>>, vector<1x1x16x16xbf16>
    %47 = vector.shape_cast %46 : vector<1x1x16x16xbf16> to vector<16x16xbf16>
    %cst_41 = arith.constant dense<0.000000e+00> : vector<128x16xf32>
    %48 = tpu.matmul %45, %47, %cst_41 {dimension_numbers = #tpu.dot_dimension_numbers<[1], [0], [0], [1], [0, 0, 1, 1], [], []>} : vector<128x16xbf16>, vector<16x16xbf16>, vector<128x16xf32> -> vector<128x16xf32>
    %49 = arith.addf %43, %48 : vector<128x16xf32>
    %c0_42 = arith.constant 0 : index
    %c16 = arith.constant 16 : index
    %c0_43 = arith.constant 0 : index
    %50 = vector.load %arg11[%c0_42, %c16, %c0_43] : memref<3x160x16xbf16, #tpu.memory_space<vmem>>, vector<1x128x16xbf16>
    %51 = vector.shape_cast %50 : vector<1x128x16xbf16> to vector<128x16xbf16>
    %c1_44 = arith.constant 1 : index
    %c0_45 = arith.constant 0 : index
    %c0_46 = arith.constant 0 : index
    %c0_47 = arith.constant 0 : index
    %52 = vector.load %arg4[%c1_44, %c0_45, %c0_46, %c0_47] : memref<3x3x16x16xbf16, #tpu.memory_space<vmem>>, vector<1x1x16x16xbf16>
    %53 = vector.shape_cast %52 : vector<1x1x16x16xbf16> to vector<16x16xbf16>
    %cst_48 = arith.constant dense<0.000000e+00> : vector<128x16xf32>
    %54 = tpu.matmul %51, %53, %cst_48 {dimension_numbers = #tpu.dot_dimension_numbers<[1], [0], [0], [1], [0, 0, 1, 1], [], []>} : vector<128x16xbf16>, vector<16x16xbf16>, vector<128x16xf32> -> vector<128x16xf32>
    %55 = arith.addf %49, %54 : vector<128x16xf32>
    %c1_49 = arith.constant 1 : index
    %c16_50 = arith.constant 16 : index
    %c0_51 = arith.constant 0 : index
    %56 = vector.load %arg11[%c1_49, %c16_50, %c0_51] : memref<3x160x16xbf16, #tpu.memory_space<vmem>>, vector<1x128x16xbf16>
    %57 = vector.shape_cast %56 : vector<1x128x16xbf16> to vector<128x16xbf16>
    %c1_52 = arith.constant 1 : index
    %c1_53 = arith.constant 1 : index
    %c0_54 = arith.constant 0 : index
    %c0_55 = arith.constant 0 : index
    %58 = vector.load %arg4[%c1_52, %c1_53, %c0_54, %c0_55] : memref<3x3x16x16xbf16, #tpu.memory_space<vmem>>, vector<1x1x16x16xbf16>
    %59 = vector.shape_cast %58 : vector<1x1x16x16xbf16> to vector<16x16xbf16>
    %cst_56 = arith.constant dense<0.000000e+00> : vector<128x16xf32>
    %60 = tpu.matmul %57, %59, %cst_56 {dimension_numbers = #tpu.dot_dimension_numbers<[1], [0], [0], [1], [0, 0, 1, 1], [], []>} : vector<128x16xbf16>, vector<16x16xbf16>, vector<128x16xf32> -> vector<128x16xf32>
    %61 = arith.addf %55, %60 : vector<128x16xf32>
    %c2_57 = arith.constant 2 : index
    %c16_58 = arith.constant 16 : index
    %c0_59 = arith.constant 0 : index
    %62 = vector.load %arg11[%c2_57, %c16_58, %c0_59] : memref<3x160x16xbf16, #tpu.memory_space<vmem>>, vector<1x128x16xbf16>
    %63 = vector.shape_cast %62 : vector<1x128x16xbf16> to vector<128x16xbf16>
    %c1_60 = arith.constant 1 : index
    %c2_61 = arith.constant 2 : index
    %c0_62 = arith.constant 0 : index
    %c0_63 = arith.constant 0 : index
    %64 = vector.load %arg4[%c1_60, %c2_61, %c0_62, %c0_63] : memref<3x3x16x16xbf16, #tpu.memory_space<vmem>>, vector<1x1x16x16xbf16>
    %65 = vector.shape_cast %64 : vector<1x1x16x16xbf16> to vector<16x16xbf16>
    %cst_64 = arith.constant dense<0.000000e+00> : vector<128x16xf32>
    %66 = tpu.matmul %63, %65, %cst_64 {dimension_numbers = #tpu.dot_dimension_numbers<[1], [0], [0], [1], [0, 0, 1, 1], [], []>} : vector<128x16xbf16>, vector<16x16xbf16>, vector<128x16xf32> -> vector<128x16xf32>
    %67 = arith.addf %61, %66 : vector<128x16xf32>
    %c0_65 = arith.constant 0 : index
    %c32 = arith.constant 32 : index
    %c0_66 = arith.constant 0 : index
    %68 = vector.load %arg11[%c0_65, %c32, %c0_66] : memref<3x160x16xbf16, #tpu.memory_space<vmem>>, vector<1x128x16xbf16>
    %69 = vector.shape_cast %68 : vector<1x128x16xbf16> to vector<128x16xbf16>
    %c2_67 = arith.constant 2 : index
    %c0_68 = arith.constant 0 : index
    %c0_69 = arith.constant 0 : index
    %c0_70 = arith.constant 0 : index
    %70 = vector.load %arg4[%c2_67, %c0_68, %c0_69, %c0_70] : memref<3x3x16x16xbf16, #tpu.memory_space<vmem>>, vector<1x1x16x16xbf16>
    %71 = vector.shape_cast %70 : vector<1x1x16x16xbf16> to vector<16x16xbf16>
    %cst_71 = arith.constant dense<0.000000e+00> : vector<128x16xf32>
    %72 = tpu.matmul %69, %71, %cst_71 {dimension_numbers = #tpu.dot_dimension_numbers<[1], [0], [0], [1], [0, 0, 1, 1], [], []>} : vector<128x16xbf16>, vector<16x16xbf16>, vector<128x16xf32> -> vector<128x16xf32>
    %73 = arith.addf %67, %72 : vector<128x16xf32>
    %c1_72 = arith.constant 1 : index
    %c32_73 = arith.constant 32 : index
    %c0_74 = arith.constant 0 : index
    %74 = vector.load %arg11[%c1_72, %c32_73, %c0_74] : memref<3x160x16xbf16, #tpu.memory_space<vmem>>, vector<1x128x16xbf16>
    %75 = vector.shape_cast %74 : vector<1x128x16xbf16> to vector<128x16xbf16>
    %c2_75 = arith.constant 2 : index
    %c1_76 = arith.constant 1 : index
    %c0_77 = arith.constant 0 : index
    %c0_78 = arith.constant 0 : index
    %76 = vector.load %arg4[%c2_75, %c1_76, %c0_77, %c0_78] : memref<3x3x16x16xbf16, #tpu.memory_space<vmem>>, vector<1x1x16x16xbf16>
    %77 = vector.shape_cast %76 : vector<1x1x16x16xbf16> to vector<16x16xbf16>
    %cst_79 = arith.constant dense<0.000000e+00> : vector<128x16xf32>
    %78 = tpu.matmul %75, %77, %cst_79 {dimension_numbers = #tpu.dot_dimension_numbers<[1], [0], [0], [1], [0, 0, 1, 1], [], []>} : vector<128x16xbf16>, vector<16x16xbf16>, vector<128x16xf32> -> vector<128x16xf32>
    %79 = arith.addf %73, %78 : vector<128x16xf32>
    %c2_80 = arith.constant 2 : index
    %c32_81 = arith.constant 32 : index
    %c0_82 = arith.constant 0 : index
    %80 = vector.load %arg11[%c2_80, %c32_81, %c0_82] : memref<3x160x16xbf16, #tpu.memory_space<vmem>>, vector<1x128x16xbf16>
    %81 = vector.shape_cast %80 : vector<1x128x16xbf16> to vector<128x16xbf16>
    %c2_83 = arith.constant 2 : index
    %c2_84 = arith.constant 2 : index
    %c0_85 = arith.constant 0 : index
    %c0_86 = arith.constant 0 : index
    %82 = vector.load %arg4[%c2_83, %c2_84, %c0_85, %c0_86] : memref<3x3x16x16xbf16, #tpu.memory_space<vmem>>, vector<1x1x16x16xbf16>
    %83 = vector.shape_cast %82 : vector<1x1x16x16xbf16> to vector<16x16xbf16>
    %cst_87 = arith.constant dense<0.000000e+00> : vector<128x16xf32>
    %84 = tpu.matmul %81, %83, %cst_87 {dimension_numbers = #tpu.dot_dimension_numbers<[1], [0], [0], [1], [0, 0, 1, 1], [], []>} : vector<128x16xbf16>, vector<16x16xbf16>, vector<128x16xf32> -> vector<128x16xf32>
    %85 = arith.addf %79, %84 : vector<128x16xf32>
    %c0_88 = arith.constant 0 : index
    %c0_89 = arith.constant 0 : index
    %86 = vector.load %arg8[%c0_88, %c0_89] : memref<1x16xf32, #tpu.memory_space<vmem>>, vector<1x16xf32>
    %87 = vector.broadcast %86 : vector<1x16xf32> to vector<128x16xf32>
    %88 = arith.addf %85, %87 : vector<128x16xf32>
    %cst_90 = arith.constant 0.000000e+00 : f32
    %89 = vector.broadcast %cst_90 : f32 to vector<128x16xf32>
    %90 = arith.maximumf %88, %89 : vector<128x16xf32>
    %91 = arith.truncf %90 : vector<128x16xf32> to vector<128x16xbf16>
    %c0_91 = arith.constant 0 : index
    %c0_92 = arith.constant 0 : index
    %92 = vector.load %arg5[%c0_91, %c0_92] : memref<16x16xbf16, #tpu.memory_space<vmem>>, vector<16x16xbf16>
    %cst_93 = arith.constant dense<0.000000e+00> : vector<128x16xf32>
    %93 = tpu.matmul %91, %92, %cst_93 {dimension_numbers = #tpu.dot_dimension_numbers<[1], [0], [0], [1], [0, 0, 1, 1], [], []>} : vector<128x16xbf16>, vector<16x16xbf16>, vector<128x16xf32> -> vector<128x16xf32>
    %c0_94 = arith.constant 0 : index
    %c0_95 = arith.constant 0 : index
    %94 = vector.load %arg9[%c0_94, %c0_95] : memref<1x16xf32, #tpu.memory_space<vmem>>, vector<1x16xf32>
    %95 = vector.broadcast %94 : vector<1x16xf32> to vector<128x16xf32>
    %96 = arith.addf %93, %95 : vector<128x16xf32>
    %97 = arith.addf %96, %17 : vector<128x16xf32>
    %cst_96 = arith.constant 0.000000e+00 : f32
    %98 = vector.broadcast %cst_96 : f32 to vector<128x16xf32>
    %99 = arith.maximumf %97, %98 : vector<128x16xf32>
    %100 = vector.shape_cast %99 : vector<128x16xf32> to vector<1x128x16xf32>
    %c0_97 = arith.constant 0 : index
    %c0_98 = arith.constant 0 : index
    %c0_99 = arith.constant 0 : index
    %101 = vector.load %arg10[%c0_97, %c0_98, %c0_99] : memref<1x128x16xf32, #tpu.memory_space<vmem>>, vector<1x128x16xf32>
    tpu.vector_store %arg10[%c0_97, %c0_98, %c0_99], %100 {strides = array<i32>} : memref<1x128x16xf32, #tpu.memory_space<vmem>>, vector<1x128x16xf32>,
    return
  }
  func.func @transform_0(%arg0: i32) -> (i32, i32, i32) {
    %c0_i32 = arith.constant 0 : i32
    %c0_i32_0 = arith.constant 0 : i32
    %c0_i32_1 = arith.constant 0 : i32
    return %arg0, %c0_i32, %c0_i32_0 : i32, i32, i32
  }
  func.func @transform_1(%arg0: i32) -> (i32, i32) {
    %c0_i32 = arith.constant 0 : i32
    %c0_i32_0 = arith.constant 0 : i32
    %c0_i32_1 = arith.constant 0 : i32
    return %c0_i32, %c0_i32_0 : i32, i32
  }
  func.func @transform_2(%arg0: i32) -> (i32, i32) {
    %c0_i32 = arith.constant 0 : i32
    %c0_i32_0 = arith.constant 0 : i32
    %c0_i32_1 = arith.constant 0 : i32
    return %c0_i32, %c0_i32_0 : i32, i32
  }
  func.func @transform_3(%arg0: i32) -> (i32, i32, i32, i32) {
    %c0_i32 = arith.constant 0 : i32
    %c0_i32_0 = arith.constant 0 : i32
    %c0_i32_1 = arith.constant 0 : i32
    %c0_i32_2 = arith.constant 0 : i32
    %c0_i32_3 = arith.constant 0 : i32
    return %c0_i32, %c0_i32_0, %c0_i32_1, %c0_i32_2 : i32, i32, i32, i32
  }
  func.func @transform_4(%arg0: i32) -> (i32, i32) {
    %c0_i32 = arith.constant 0 : i32
    %c0_i32_0 = arith.constant 0 : i32
    %c0_i32_1 = arith.constant 0 : i32
    return %c0_i32, %c0_i32_0 : i32, i32
  }
  func.func @transform_5(%arg0: i32) -> (i32, i32) {
    %c0_i32 = arith.constant 0 : i32
    %c0_i32_0 = arith.constant 0 : i32
    %c0_i32_1 = arith.constant 0 : i32
    return %c0_i32, %c0_i32_0 : i32, i32
  }
  func.func @transform_6(%arg0: i32) -> (i32, i32) {
    %c0_i32 = arith.constant 0 : i32
    %c0_i32_0 = arith.constant 0 : i32
    %c0_i32_1 = arith.constant 0 : i32
    return %c0_i32, %c0_i32_0 : i32, i32
  }
  func.func @transform_7(%arg0: i32) -> (i32, i32) {
    %c0_i32 = arith.constant 0 : i32
    %c0_i32_0 = arith.constant 0 : i32
    %c0_i32_1 = arith.constant 0 : i32
    return %c0_i32, %c0_i32_0 : i32, i32
  }
  func.func @transform_8(%arg0: i32) -> (i32, i32) {
    %c0_i32 = arith.constant 0 : i32
    %c0_i32_0 = arith.constant 0 : i32
    %c0_i32_1 = arith.constant 0 : i32
    return %c0_i32, %c0_i32_0 : i32, i32
  }
  func.func @transform_9(%arg0: i32) -> (i32, i32, i32) {
    %c0_i32 = arith.constant 0 : i32
    %c0_i32_0 = arith.constant 0 : i32
    %c0_i32_1 = arith.constant 0 : i32
    return %arg0, %c0_i32, %c0_i32_0 : i32, i32, i32
  }
}

</mosaic_0001>

<llo_original>
// kernel: conv_block_2d.1
$region0: #{conv_block_2d.1}
  #allocation0 [shape = 'u32[]', space=smem, size = 0x4, offset = 0x4, fixed_abs, tag = 'smem constant byte address 0x4 - core index']
  #allocation1 [shape = 'u32[144,128]{1,0:T(1,128)}', space=vmem, size = 0x12000, scoped, tag = 'internal scratch']
  #allocation2 [shape = 'bf16[3,160,16]{2,1,0:T(16,128)(2,1)}', space=vmem, size = 0x1e000, scoped, tag = 'scratch operand']
  %s0 = inlined_call_operand.vmem [shape: bf16[2,176,16], index: 0, kind: input, shape index: {}]
  %s1 = inlined_call_operand.vmem [shape: f32[176,1], index: 1, kind: input, shape index: {}]
  %s2 = inlined_call_operand.vmem [shape: bf16[16,32], index: 2, kind: input, shape index: {}]
  %s3 = inlined_call_operand.vmem [shape: bf16[3,3,16,16], index: 3, kind: input, shape index: {}]
  %s4 = inlined_call_operand.vmem [shape: bf16[16,16], index: 4, kind: input, shape index: {}]
  %s5 = inlined_call_operand.vmem [shape: f32[1,16], index: 5, kind: input, shape index: {}]
  %s6 = inlined_call_operand.vmem [shape: f32[1,16], index: 6, kind: input, shape index: {}]
  %s7 = inlined_call_operand.vmem [shape: f32[1,16], index: 7, kind: input, shape index: {}]
  %s8 = inlined_call_operand.vmem [shape: f32[1,16], index: 8, kind: input, shape index: {}]
  %s9 = inlined_call_operand.vmem [shape: f32[2,128,16], index: 9, kind: output, shape index: {}]
  %s10 = sld [smem:[#allocation0]]
  $region69: #{conv_block_2d.1} parent=0
    _
  %s12 = ssub.s32 1, %s10
  %s13 = scalar_select 0, %s12, %s10
  loop: start=0, step=1, limit=4
  $region2: #{conv_block_2d.1} parent=0 // loop_pre_header
    _
  $region3: #{conv_block_2d.1} parent=0 // loop_header
    %s15 = sphi 0, %s19
    %p16 = scmp.ge.s32.totalorder %s15, 4
    %s25 = sphi 0, %s27
    %s28 = sphi 0, %s25
    %s29 = sphi 0, %s28
    %s45 = sphi 0, %s29
    %s49 = sphi 0, %s49
    %s51 = sphi 0, %s49
    %s52 = sphi 0, %s51
    %s66 = sphi 0, %s52
    %s70 = sphi 0, %s70
    %s72 = sphi 0, %s70
    %s73 = sphi 0, %s72
    %s87 = sphi 0, %s73
    %s91 = sphi 0, %s91
    %s93 = sphi 0, %s91
    %s94 = sphi 0, %s93
    %s108 = sphi 0, %s94
    %s112 = sphi 0, %s112
    %s114 = sphi 0, %s112
    %s115 = sphi 0, %s114
    %s129 = sphi 0, %s115
    %s133 = sphi 0, %s133
    %s135 = sphi 0, %s133
    %s136 = sphi 0, %s135
    %s150 = sphi 0, %s136
    %s154 = sphi 0, %s154
    %s156 = sphi 0, %s154
    %s157 = sphi 0, %s156
    %s171 = sphi 0, %s157
    %s175 = sphi 0, %s175
    %s177 = sphi 0, %s175
    %s178 = sphi 0, %s177
    %s192 = sphi 0, %s178
    %s196 = sphi 0, %s196
    %s198 = sphi 0, %s196
    %s199 = sphi 0, %s198
    %s213 = sphi 0, %s199
    %s219 = sphi 0, %s221
    %s222 = sphi 0, %s219
    %s223 = sphi 0, %s222
    %s239 = sphi 0, %s223
  $region4: #{conv_block_2d.1} parent=0 // loop_header_branch
    %18 = sbr.rel (%p16) target = $region8
  $region5: #{conv_block_2d.1} parent=0 // loop_body
    %s20 = ssub.s32 %s15, 1
    %s21 = ssub.s32 %s15, 2
    %s22 = sadd.s32 %s15, 1
    %s23 = ssub.s32 %s15, %s22
    %p24 = scmp.eq.s32.totalorder %s23, 0
    %s26 = sadd.s32 %s25, 1
    %s27 = scalar_select %p24, %s25, %s26
    %p30 = pneg %p24
    %p31 = scmp.eq.s32.totalorder %s15, 1
    %p32 = por %p30, %p31
    %p33 = scmp.ne.s32.totalorder %s25, %s28
    %p34 = scmp.eq.s32.totalorder %s15, 0
    %p35 = por %p33, %p34
    %p36 = scmp.ne.s32.totalorder %s25, %s28
    %p37 = scmp.eq.s32.totalorder %s20, 1
    %p38 = por %p36, %p37
    %p39 = scmp.ne.s32.totalorder %s28, %s29
    %p40 = scmp.eq.s32.totalorder %s20, 0
    %p41 = por %p39, %p40
    %p42 = scmp.ne.s32.totalorder %s28, %s29
    %p43 = scmp.eq.s32.totalorder %s21, 1
    %p44 = por %p42, %p43
    %p46 = scmp.ne.s32.totalorder %s29, %s45
    %p47 = scmp.eq.s32.totalorder %s21, 0
    %p48 = por %p46, %p47
    %s50 = sadd.s32 %s49, 1
    %p53 = scmp.eq.s32.totalorder %s15, 1
    %p54 = scmp.ne.s32.totalorder %s49, %s51
    %p55 = scmp.eq.s32.totalorder %s15, 0
    %p56 = por %p54, %p55
    %p57 = scmp.ne.s32.totalorder %s49, %s51
    %p58 = scmp.eq.s32.totalorder %s20, 1
    %p59 = por %p57, %p58
    %p60 = scmp.ne.s32.totalorder %s51, %s52
    %p61 = scmp.eq.s32.totalorder %s20, 0
    %p62 = por %p60, %p61
    %p63 = scmp.ne.s32.totalorder %s51, %s52
    %p64 = scmp.eq.s32.totalorder %s21, 1
    %p65 = por %p63, %p64
    %p67 = scmp.ne.s32.totalorder %s52, %s66
    %p68 = scmp.eq.s32.totalorder %s21, 0
    %p69 = por %p67, %p68
    %s71 = sadd.s32 %s70, 1
    %p74 = scmp.eq.s32.totalorder %s15, 1
    %p75 = scmp.ne.s32.totalorder %s70, %s72
    %p76 = scmp.eq.s32.totalorder %s15, 0
    %p77 = por %p75, %p76
    %p78 = scmp.ne.s32.totalorder %s70, %s72
    %p79 = scmp.eq.s32.totalorder %s20, 1
    %p80 = por %p78, %p79
    %p81 = scmp.ne.s32.totalorder %s72, %s73
    %p82 = scmp.eq.s32.totalorder %s20, 0
    %p83 = por %p81, %p82
    %p84 = scmp.ne.s32.totalorder %s72, %s73
    %p85 = scmp.eq.s32.totalorder %s21, 1
    %p86 = por %p84, %p85
    %p88 = scmp.ne.s32.totalorder %s73, %s87
    %p89 = scmp.eq.s32.totalorder %s21, 0
    %p90 = por %p88, %p89
    %s92 = sadd.s32 %s91, 1
    %p95 = scmp.eq.s32.totalorder %s15, 1
    %p96 = scmp.ne.s32.totalorder %s91, %s93
    %p97 = scmp.eq.s32.totalorder %s15, 0
    %p98 = por %p96, %p97
    %p99 = scmp.ne.s32.totalorder %s91, %s93
    %p100 = scmp.eq.s32.totalorder %s20, 1
    %p101 = por %p99, %p100
    %p102 = scmp.ne.s32.totalorder %s93, %s94
    %p103 = scmp.eq.s32.totalorder %s20, 0
    %p104 = por %p102, %p103
    %p105 = scmp.ne.s32.totalorder %s93, %s94
    %p106 = scmp.eq.s32.totalorder %s21, 1
    %p107 = por %p105, %p106
    %p109 = scmp.ne.s32.totalorder %s94, %s108
    %p110 = scmp.eq.s32.totalorder %s21, 0
    %p111 = por %p109, %p110
    %s113 = sadd.s32 %s112, 1
    %p116 = scmp.eq.s32.totalorder %s15, 1
    %p117 = scmp.ne.s32.totalorder %s112, %s114
    %p118 = scmp.eq.s32.totalorder %s15, 0
    %p119 = por %p117, %p118
    %p120 = scmp.ne.s32.totalorder %s112, %s114
    %p121 = scmp.eq.s32.totalorder %s20, 1
    %p122 = por %p120, %p121
    %p123 = scmp.ne.s32.totalorder %s114, %s115
    %p124 = scmp.eq.s32.totalorder %s20, 0
    %p125 = por %p123, %p124
    %p126 = scmp.ne.s32.totalorder %s114, %s115
    %p127 = scmp.eq.s32.totalorder %s21, 1
    %p128 = por %p126, %p127
    %p130 = scmp.ne.s32.totalorder %s115, %s129
    %p131 = scmp.eq.s32.totalorder %s21, 0
    %p132 = por %p130, %p131
    %s134 = sadd.s32 %s133, 1
    %p137 = scmp.eq.s32.totalorder %s15, 1
    %p138 = scmp.ne.s32.totalorder %s133, %s135
    %p139 = scmp.eq.s32.totalorder %s15, 0
    %p140 = por %p138, %p139
    %p141 = scmp.ne.s32.totalorder %s133, %s135
    %p142 = scmp.eq.s32.totalorder %s20, 1
    %p143 = por %p141, %p142
    %p144 = scmp.ne.s32.totalorder %s135, %s136
    %p145 = scmp.eq.s32.totalorder %s20, 0
    %p146 = por %p144, %p145
    %p147 = scmp.ne.s32.totalorder %s135, %s136
    %p148 = scmp.eq.s32.totalorder %s21, 1
    %p149 = por %p147, %p148
    %p151 = scmp.ne.s32.totalorder %s136, %s150
    %p152 = scmp.eq.s32.totalorder %s21, 0
    %p153 = por %p151, %p152
    %s155 = sadd.s32 %s154, 1
    %p158 = scmp.eq.s32.totalorder %s15, 1
    %p159 = scmp.ne.s32.totalorder %s154, %s156
    %p160 = scmp.eq.s32.totalorder %s15, 0
    %p161 = por %p159, %p160
    %p162 = scmp.ne.s32.totalorder %s154, %s156
    %p163 = scmp.eq.s32.totalorder %s20, 1
    %p164 = por %p162, %p163
    %p165 = scmp.ne.s32.totalorder %s156, %s157
    %p166 = scmp.eq.s32.totalorder %s20, 0
    %p167 = por %p165, %p166
    %p168 = scmp.ne.s32.totalorder %s156, %s157
    %p169 = scmp.eq.s32.totalorder %s21, 1
    %p170 = por %p168, %p169
    %p172 = scmp.ne.s32.totalorder %s157, %s171
    %p173 = scmp.eq.s32.totalorder %s21, 0
    %p174 = por %p172, %p173
    %s176 = sadd.s32 %s175, 1
    %p179 = scmp.eq.s32.totalorder %s15, 1
    %p180 = scmp.ne.s32.totalorder %s175, %s177
    %p181 = scmp.eq.s32.totalorder %s15, 0
    %p182 = por %p180, %p181
    %p183 = scmp.ne.s32.totalorder %s175, %s177
    %p184 = scmp.eq.s32.totalorder %s20, 1
    %p185 = por %p183, %p184
    %p186 = scmp.ne.s32.totalorder %s177, %s178
    %p187 = scmp.eq.s32.totalorder %s20, 0
    %p188 = por %p186, %p187
    %p189 = scmp.ne.s32.totalorder %s177, %s178
    %p190 = scmp.eq.s32.totalorder %s21, 1
    %p191 = por %p189, %p190
    %p193 = scmp.ne.s32.totalorder %s178, %s192
    %p194 = scmp.eq.s32.totalorder %s21, 0
    %p195 = por %p193, %p194
    %s197 = sadd.s32 %s196, 1
    %p200 = scmp.eq.s32.totalorder %s15, 1
    %p201 = scmp.ne.s32.totalorder %s196, %s198
    %p202 = scmp.eq.s32.totalorder %s15, 0
    %p203 = por %p201, %p202
    %p204 = scmp.ne.s32.totalorder %s196, %s198
    %p205 = scmp.eq.s32.totalorder %s20, 1
    %p206 = por %p204, %p205
    %p207 = scmp.ne.s32.totalorder %s198, %s199
    %p208 = scmp.eq.s32.totalorder %s20, 0
    %p209 = por %p207, %p208
    %p210 = scmp.ne.s32.totalorder %s198, %s199
    %p211 = scmp.eq.s32.totalorder %s21, 1
    %p212 = por %p210, %p211
    %p214 = scmp.ne.s32.totalorder %s199, %s213
    %p215 = scmp.eq.s32.totalorder %s21, 0
    %p216 = por %p214, %p215
    %s217 = ssub.s32 %s15, %s22
    %p218 = scmp.eq.s32.totalorder %s217, 0
    %s220 = sadd.s32 %s219, 1
    %s221 = scalar_select %p218, %s219, %s220
    %p224 = pneg %p218
    %p225 = scmp.eq.s32.totalorder %s15, 1
    %p226 = por %p224, %p225
    %p227 = scmp.ne.s32.totalorder %s219, %s222
    %p228 = scmp.eq.s32.totalorder %s15, 0
    %p229 = por %p227, %p228
    %p230 = scmp.ne.s32.totalorder %s219, %s222
    %p231 = scmp.eq.s32.totalorder %s20, 1
    %p232 = por %p230, %p231
    %p233 = scmp.ne.s32.totalorder %s222, %s223
    %p234 = scmp.eq.s32.totalorder %s20, 0
    %p235 = por %p233, %p234
    %p236 = scmp.ne.s32.totalorder %s222, %s223
    %p237 = scmp.eq.s32.totalorder %s21, 1
    %p238 = por %p236, %p237
    %p240 = scmp.ne.s32.totalorder %s223, %s239
    %p241 = scmp.eq.s32.totalorder %s21, 0
    %p242 = por %p240, %p241
    %p243 = scmp.le.s32.totalorder 1, %s15
    %p244 = scmp.lt.s32.totalorder %s15, 3
    %p245 = pnand %p243, %p244
    %p246 = pneg %p245
    // Predicated region
    $region9: #{conv_block_2d.1} parent=5 // pred_check
      _
    $region10: #{conv_block_2d.1} parent=5 // pred_check_branch
      %248 = sbr.rel (%p245) target = $region12
    $region11: #{conv_block_2d.1} parent=5 // pred_region
      %s249 = ssub.s32 %s15, 1
      // Predicated region
      $region13: #{conv_block_2d.1} parent=11 // pred_check
        %p250 = pneg %p62
      $region14: #{conv_block_2d.1} parent=11 // pred_check_branch
        %252 = sbr.rel (%p250) target = $region16
      $region15: #{conv_block_2d.1} parent=11 // pred_region
        _
      $region16: #{conv_block_2d.1} parent=11 // pred_fallthru
        _
      // Predicated region
      $region17: #{conv_block_2d.1} parent=11 // pred_check
        %p253 = pneg %p83
      $region18: #{conv_block_2d.1} parent=11 // pred_check_branch
        %255 = sbr.rel (%p253) target = $region20
      $region19: #{conv_block_2d.1} parent=11 // pred_region
        _
      $region20: #{conv_block_2d.1} parent=11 // pred_fallthru
        _
      // Predicated region
      $region21: #{conv_block_2d.1} parent=11 // pred_check
        %p256 = pneg %p104
      $region22: #{conv_block_2d.1} parent=11 // pred_check_branch
        %258 = sbr.rel (%p256) target = $region24
      $region23: #{conv_block_2d.1} parent=11 // pred_region
        _
      $region24: #{conv_block_2d.1} parent=11 // pred_fallthru
        _
      // Predicated region
      $region25: #{conv_block_2d.1} parent=11 // pred_check
        %p259 = pneg %p125
      $region26: #{conv_block_2d.1} parent=11 // pred_check_branch
        %261 = sbr.rel (%p259) target = $region28
      $region27: #{conv_block_2d.1} parent=11 // pred_region
        _
      $region28: #{conv_block_2d.1} parent=11 // pred_fallthru
        _
      // Predicated region
      $region29: #{conv_block_2d.1} parent=11 // pred_check
        %p262 = pneg %p146
      $region30: #{conv_block_2d.1} parent=11 // pred_check_branch
        %264 = sbr.rel (%p262) target = $region32
      $region31: #{conv_block_2d.1} parent=11 // pred_region
        _
      $region32: #{conv_block_2d.1} parent=11 // pred_fallthru
        _
      // Predicated region
      $region33: #{conv_block_2d.1} parent=11 // pred_check
        %p265 = pneg %p167
      $region34: #{conv_block_2d.1} parent=11 // pred_check_branch
        %267 = sbr.rel (%p265) target = $region36
      $region35: #{conv_block_2d.1} parent=11 // pred_region
        _
      $region36: #{conv_block_2d.1} parent=11 // pred_fallthru
        _
      // Predicated region
      $region37: #{conv_block_2d.1} parent=11 // pred_check
        %p268 = pneg %p188
      $region38: #{conv_block_2d.1} parent=11 // pred_check_branch
        %270 = sbr.rel (%p268) target = $region40
      $region39: #{conv_block_2d.1} parent=11 // pred_region
        _
      $region40: #{conv_block_2d.1} parent=11 // pred_fallthru
        _
      // Predicated region
      $region41: #{conv_block_2d.1} parent=11 // pred_check
        %p271 = pneg %p209
      $region42: #{conv_block_2d.1} parent=11 // pred_check_branch
        %273 = sbr.rel (%p271) target = $region44
      $region43: #{conv_block_2d.1} parent=11 // pred_region
        _
      $region44: #{conv_block_2d.1} parent=11 // pred_fallthru
        _
    $region12: #{conv_block_2d.1} parent=5 // pred_fallthru
      _
    %p274 = scmp.lt.s32.totalorder %s15, 2
    // Predicated region
    $region45: #{conv_block_2d.1} parent=5 // pred_check
      %p275 = pneg %p274
    $region46: #{conv_block_2d.1} parent=5 // pred_check_branch
      %277 = sbr.rel (%p275) target = $region48
    $region47: #{conv_block_2d.1} parent=5 // pred_region
      // Predicated region
      $region49: #{conv_block_2d.1} parent=47 // pred_check
        %p278 = pneg %p35
      $region50: #{conv_block_2d.1} parent=47 // pred_check_branch
        %280 = sbr.rel (%p278) target = $region52
      $region51: #{conv_block_2d.1} parent=47 // pred_region
        %p281 = scmp.lt.s32.totalorder %s15, 1
        %s282 = scalar_select %p281, %s15, 1
        %s283 = smul.addr %s282, 22
        %s284 = smul.addr %s283, 4
        %s285 = scalar_lea.vmem %s0, %s284
      $region52: #{conv_block_2d.1} parent=47 // pred_fallthru
        _
    $region48: #{conv_block_2d.1} parent=5 // pred_fallthru
      _
    %p286 = scmp.le.s32.totalorder 1, %s15
    %p287 = scmp.lt.s32.totalorder %s15, 3
    %p288 = pnand %p286, %p287
    %p289 = pneg %p288
    // Predicated region
    $region53: #{conv_block_2d.1} parent=5 // pred_check
      _
    $region54: #{conv_block_2d.1} parent=5 // pred_check_branch
      %291 = sbr.rel (%p288) target = $region56
    $region55: #{conv_block_2d.1} parent=5 // pred_region
      %s292 = ssub.s32 %s15, 1
      %p293 = scmp.lt.s32.totalorder %s20, 1
      %s294 = scalar_select %p293, %s20, 1
      %s295 = smul.addr %s294, 22
      %s296 = smul.addr %s295, 4
      %s297 = scalar_lea.vmem %s0, %s296
      %p298 = pneg %p41
      %p299 = pneg %p38
      %p300 = pneg %p62
      %p301 = pneg %p59
      %p302 = pneg %p83
      %p303 = pneg %p80
      %p304 = pneg %p104
      %p305 = pneg %p101
      %p306 = pneg %p125
      %p307 = pneg %p122
      %p308 = pneg %p146
      %p309 = pneg %p143
      %p310 = pneg %p167
      %p311 = pneg %p164
      %p312 = pneg %p188
      %p313 = pneg %p185
      %p314 = pneg %p209
      %p315 = pneg %p206
      %p316 = pneg %p235
      %p317 = pneg %p232
      %p318 = scmp.lt.s32.totalorder %s20, 1
      %s319 = scalar_select %p318, %s20, 1
      %s320 = smul.addr %s319, 16
      %s321 = smul.addr %s320, 8
      %s322 = scalar_lea.vmem %s9, %s321
      %p323 = scmp.lt.s32.totalorder %s20, 1
      %s324 = scalar_select %p323, %s20, 1
      %s325 = smul.addr %s324, 22
      %s326 = smul.addr %s325, 4
      %s327 = scalar_lea.vmem %s0, %s326
      %p328 = scmp.lt.s32.totalorder %s20, 1
      %s329 = scalar_select %p328, %s20, 1
      %s330 = smul.addr %s329, 16
      %s331 = smul.addr %s330, 8
      %s332 = scalar_lea.vmem %s9, %s331
      %v334 = vld [vmem:[%s327] sm:$0xf]
      %v335 = vld [vmem:[%s327 + $0x4] sm:$0xf]
      %v336 = vld [vmem:[%s327 + $0x8] sm:$0xf]
      %v337 = vld [vmem:[%s327 + $0xc] sm:$0xf]
      %v338 = vld [vmem:[%s327 + $0x10] sm:$0xf]
      %v339 = vld [vmem:[%s327 + $0x14] sm:$0xf]
      %v340 = vld [vmem:[%s327 + $0x18] sm:$0xf]
      %v341 = vld [vmem:[%s327 + $0x1c] sm:$0xf]
      %v342 = vld [vmem:[%s327 + $0x20] sm:$0xf]
      %v343 = vld [vmem:[%s327 + $0x24] sm:$0xf]
      %v344 = vld [vmem:[%s327 + $0x28] sm:$0xf]
      %v345 = vld [vmem:[%s327 + $0x2c] sm:$0xf]
      %v346 = vld [vmem:[%s327 + $0x30] sm:$0xf]
      %v347 = vld [vmem:[%s327 + $0x34] sm:$0xf]
      %v348 = vld [vmem:[%s327 + $0x38] sm:$0xf]
      %v349 = vld [vmem:[%s327 + $0x3c] sm:$0xf]
      %v350 = vld [vmem:[%s327 + $0x40] sm:$0xf]
      %v351 = vld [vmem:[%s327 + $0x44] sm:$0xf]
      %v352 = vld [vmem:[%s327 + $0x48] sm:$0xf]
      %v353 = vld [vmem:[%s327 + $0x4c] sm:$0xf]
      %v354 = vld [vmem:[%s327 + $0x50] sm:$0xf]
      %v355 = vld [vmem:[%s327 + $0x54] sm:$0xf]
      %v356 = vld [vmem:[%s2] sm:$0xf]
      %v357 = vld [vmem:[%s2 + $0x4] sm:$0xf]
      %v380 = vunpack.c.l.b16 %v334
      %v381 = vunpack.c.l.b16 %v335
      %v382 = vunpack.c.l.b16 %v336
      %v383 = vunpack.c.l.b16 %v337
      %v384 = vunpack.c.l.b16 %v338
      %v385 = vunpack.c.l.b16 %v339
      %v386 = vunpack.c.l.b16 %v340
      %v387 = vunpack.c.l.b16 %v341
      %v388 = vunpack.c.l.b16 %v342
      %v389 = vunpack.c.l.b16 %v343
      %v390 = vunpack.c.l.b16 %v344
      %v391 = vunpack.c.l.b16 %v345
      %v392 = vunpack.c.l.b16 %v346
      %v393 = vunpack.c.l.b16 %v347
      %v394 = vunpack.c.l.b16 %v348
      %v395 = vunpack.c.l.b16 %v349
      %v396 = vunpack.c.l.b16 %v350
      %v397 = vunpack.c.l.b16 %v351
      %v398 = vunpack.c.l.b16 %v352
      %v399 = vunpack.c.l.b16 %v353
      %v400 = vunpack.c.l.b16 %v354
      %v401 = vunpack.c.l.b16 %v355
      %v402 = vpack.c.b16 %v381, %v380
      %v403 = vpack.c.b16 %v383, %v382
      %v404 = vpack.c.b16 %v385, %v384
      %v405 = vpack.c.b16 %v387, %v386
      %v406 = vpack.c.b16 %v389, %v388
      %v407 = vpack.c.b16 %v391, %v390
      %v408 = vpack.c.b16 %v393, %v392
      %v409 = vpack.c.b16 %v395, %v394
      %v410 = vpack.c.b16 %v397, %v396
      %v411 = vpack.c.b16 %v399, %v398
      %v412 = vpack.c.b16 %v401, %v400
      %v415 = vunpack.c.l.b16 %v356
      %v416 = vunpack.c.l.b16 %v357
      %v417 = vpack.c.b16 %v416, %v415
      %vm419 = vcmask 130048
      %v421 = vsel %vm419, %v402, 0
      %v424 = vsel %vm419, %v403, 0
      %v427 = vsel %vm419, %v404, 0
      %v430 = vsel %vm419, %v405, 0
      %v433 = vsel %vm419, %v406, 0
      %v436 = vsel %vm419, %v407, 0
      %v439 = vsel %vm419, %v408, 0
      %v442 = vsel %vm419, %v409, 0
      %v445 = vsel %vm419, %v410, 0
      %v448 = vsel %vm419, %v411, 0
      %v451 = vsel %vm419, %v412, 0
      %453 = vmatprep.subr.bf16.mxu0 0
      %454 = vmatpush1.bf16.msra.mxu0 %v417
      %455 = vmatprep.subr.bf16.mxu0 0
      %456 = vmatpush1.bf16.msra.mxu0 0
      %457 = vmatprep.subr.bf16.mxu0 0
      %458 = vmatpush1.bf16.msra.mxu0 0
      %459 = vmatprep.subr.bf16.mxu0 0
      %460 = vmatpush1.bf16.msra.mxu0 0
      %461 = vmatprep.subr.bf16.mxu0 0
      %462 = vmatpush1.bf16.msra.mxu0 0
      %463 = vmatprep.subr.bf16.mxu0 0
      %464 = vmatpush1.bf16.msra.mxu0 0
      %465 = vmatprep.subr.bf16.mxu0 0
      %466 = vmatpush1.bf16.msra.mxu0 0
      %467 = vmatprep.subr.bf16.mxu0 0
      %468 = vmatpush1.bf16.msra.mxu0 0
      %469 = vmatprep.subr.bf16.mxu0 0
      %470 = vmatpush1.bf16.msra.mxu0 0
      %471 = vmatprep.subr.bf16.mxu0 0
      %472 = vmatpush1.bf16.msra.mxu0 0
      %473 = vmatprep.subr.bf16.mxu0 0
      %474 = vmatpush1.bf16.msra.mxu0 0
      %475 = vmatprep.subr.bf16.mxu0 0
      %476 = vmatpush1.bf16.msra.mxu0 0
      %477 = vmatprep.subr.bf16.mxu0 0
      %478 = vmatpush1.bf16.msra.mxu0 0
      %479 = vmatprep.subr.bf16.mxu0 0
      %480 = vmatpush1.bf16.msra.mxu0 0
      %481 = vmatprep.subr.bf16.mxu0 0
      %482 = vmatpush1.bf16.msra.mxu0 0
      %483 = vmatprep.subr.bf16.mxu0 0
      %484 = vmatpush1.bf16.msra.mxu0 0
      %485 = vmatprep.mubr.bf16.mxu0 0
      %486 = vmatmul.mubr.bf16.gmra.mrb[0].mxu0 %v421
      %v487 = vpop.f32.mrb[0].mxu0
      %v488 = vadd.f32 0.0, %v487
      %v489 = vpop.f32.mrb[0].mxu0
      %v490 = vpop.f32.mrb[0].mxu0
      %v491 = vadd.f32 0.0, %v490
      %v492 = vpop.f32.mrb[0].mxu0
      %493 = vmatprep.mubr.bf16.mxu0 0
      %494 = vmatmul.mubr.bf16.gmra.mrb[0].mxu0 %v424
      %v495 = vpop.f32.mrb[0].mxu0
      %v496 = vadd.f32 0.0, %v495
      %v497 = vpop.f32.mrb[0].mxu0
      %v498 = vpop.f32.mrb[0].mxu0
      %v499 = vadd.f32 0.0, %v498
      %v500 = vpop.f32.mrb[0].mxu0
      %501 = vmatprep.mubr.bf16.mxu0 0
      %502 = vmatmul.mubr.bf16.gmra.mrb[0].mxu0 %v427
      %v503 = vpop.f32.mrb[0].mxu0
      %v504 = vadd.f32 0.0, %v503
      %v505 = vpop.f32.mrb[0].mxu0
      %v506 = vpop.f32.mrb[0].mxu0
      %v507 = vadd.f32 0.0, %v506
      %v508 = vpop.f32.mrb[0].mxu0
      %509 = vmatprep.mubr.bf16.mxu0 0
      %510 = vmatmul.mubr.bf16.gmra.mrb[0].mxu0 %v430
      %v511 = vpop.f32.mrb[0].mxu0
      %v512 = vadd.f32 0.0, %v511
      %v513 = vpop.f32.mrb[0].mxu0
      %v514 = vpop.f32.mrb[0].mxu0
      %v515 = vadd.f32 0.0, %v514
      %v516 = vpop.f32.mrb[0].mxu0
      %517 = vmatprep.mubr.bf16.mxu0 0
      %518 = vmatmul.mubr.bf16.gmra.mrb[0].mxu0 %v433
      %v519 = vpop.f32.mrb[0].mxu0
      %v520 = vadd.f32 0.0, %v519
      %v521 = vpop.f32.mrb[0].mxu0
      %v522 = vpop.f32.mrb[0].mxu0
      %v523 = vadd.f32 0.0, %v522
      %v524 = vpop.f32.mrb[0].mxu0
      %525 = vmatprep.mubr.bf16.mxu0 0
      %526 = vmatmul.mubr.bf16.gmra.mrb[0].mxu0 %v436
      %v527 = vpop.f32.mrb[0].mxu0
      %v528 = vadd.f32 0.0, %v527
      %v529 = vpop.f32.mrb[0].mxu0
      %v530 = vpop.f32.mrb[0].mxu0
      %v531 = vadd.f32 0.0, %v530
      %v532 = vpop.f32.mrb[0].mxu0
      %533 = vmatprep.mubr.bf16.mxu0 0
      %534 = vmatmul.mubr.bf16.gmra.mrb[0].mxu0 %v439
      %v535 = vpop.f32.mrb[0].mxu0
      %v536 = vadd.f32 0.0, %v535
      %v537 = vpop.f32.mrb[0].mxu0
      %v538 = vpop.f32.mrb[0].mxu0
      %v539 = vadd.f32 0.0, %v538
      %v540 = vpop.f32.mrb[0].mxu0
      %541 = vmatprep.mubr.bf16.mxu0 0
      %542 = vmatmul.mubr.bf16.gmra.mrb[0].mxu0 %v442
      %v543 = vpop.f32.mrb[0].mxu0
      %v544 = vadd.f32 0.0, %v543
      %v545 = vpop.f32.mrb[0].mxu0
      %v546 = vpop.f32.mrb[0].mxu0
      %v547 = vadd.f32 0.0, %v546
      %v548 = vpop.f32.mrb[0].mxu0
      %549 = vmatprep.mubr.bf16.mxu0 0
      %550 = vmatmul.mubr.bf16.gmra.mrb[0].mxu0 %v445
      %v551 = vpop.f32.mrb[0].mxu0
      %v552 = vadd.f32 0.0, %v551
      %v553 = vpop.f32.mrb[0].mxu0
      %v554 = vpop.f32.mrb[0].mxu0
      %v555 = vadd.f32 0.0, %v554
      %v556 = vpop.f32.mrb[0].mxu0
      %557 = vmatprep.mubr.bf16.mxu0 0
      %558 = vmatmul.mubr.bf16.gmra.mrb[0].mxu0 %v448
      %v559 = vpop.f32.mrb[0].mxu0
      %v560 = vadd.f32 0.0, %v559
      %v561 = vpop.f32.mrb[0].mxu0
      %v562 = vpop.f32.mrb[0].mxu0
      %v563 = vadd.f32 0.0, %v562
      %v564 = vpop.f32.mrb[0].mxu0
      %565 = vmatprep.mubr.bf16.mxu0 0
      %566 = vmatmul.mubr.bf16.gmra.mrb[0].mxu0 %v451
      %v567 = vpop.f32.mrb[0].mxu0
      %v568 = vadd.f32 0.0, %v567
      %v569 = vpop.f32.mrb[0].mxu0
      %v570 = vpop.f32.mrb[0].mxu0
      %v571 = vpop.f32.mrb[0].mxu0
      %572 = vdwg.mxu0
      %v573 = vld [vmem:[%s5] sm:$0x1]
      %v575 = vlaneseq
      %v576 = vshrl.u32 %v575, 7
      %v577 = vsub.s32 0, %v576
      %v578 = vrot.slane %v573, %v577
      %v580 = vadd.f32 %v488, %v578
      %v581 = vadd.f32 %v491, %v578
      %v582 = vadd.f32 %v496, %v578
      %v583 = vadd.f32 %v499, %v578
      %v584 = vadd.f32 %v504, %v578
      %v585 = vadd.f32 %v507, %v578
      %v586 = vadd.f32 %v512, %v578
      %v587 = vadd.f32 %v515, %v578
      %v588 = vadd.f32 %v520, %v578
      %v589 = vadd.f32 %v523, %v578
      %v590 = vadd.f32 %v528, %v578
      %v591 = vadd.f32 %v531, %v578
      %v592 = vadd.f32 %v536, %v578
      %v593 = vadd.f32 %v539, %v578
      %v594 = vadd.f32 %v544, %v578
      %v595 = vadd.f32 %v547, %v578
      %v596 = vadd.f32 %v552, %v578
      %v597 = vadd.f32 %v555, %v578
      %v598 = vadd.f32 %v560, %v578
      %v599 = vadd.f32 %v563, %v578
      %v600 = vadd.f32 %v568, %v578
      %v601 = vmax.f32 %v580, 0.0
      %v602 = vmax.f32 %v581, 0.0
      %v603 = vmax.f32 %v582, 0.0
      %v604 = vmax.f32 %v583, 0.0
      %v605 = vmax.f32 %v584, 0.0
      %v606 = vmax.f32 %v585, 0.0
      %v607 = vmax.f32 %v586, 0.0
      %v608 = vmax.f32 %v587, 0.0
      %v609 = vmax.f32 %v588, 0.0
      %v610 = vmax.f32 %v589, 0.0
      %v611 = vmax.f32 %v590, 0.0
      %v612 = vmax.f32 %v591, 0.0
      %v613 = vmax.f32 %v592, 0.0
      %v614 = vmax.f32 %v593, 0.0
      %v615 = vmax.f32 %v594, 0.0
      %v616 = vmax.f32 %v595, 0.0
      %v617 = vmax.f32 %v596, 0.0
      %v618 = vmax.f32 %v597, 0.0
      %v619 = vmax.f32 %v598, 0.0
      %v620 = vmax.f32 %v599, 0.0
      %v621 = vmax.f32 %v600, 0.0
      %v622 = vld [vmem:[%s1] sm:$0xff]
      %v623 = vld [vmem:[%s1 + $0x8] sm:$0xff]
      %v624 = vld [vmem:[%s1 + $0x10] sm:$0xff]
      %v625 = vld [vmem:[%s1 + $0x18] sm:$0xff]
      %v626 = vld [vmem:[%s1 + $0x20] sm:$0xff]
      %v627 = vld [vmem:[%s1 + $0x28] sm:$0xff]
      %v628 = vld [vmem:[%s1 + $0x30] sm:$0xff]
      %v629 = vld [vmem:[%s1 + $0x38] sm:$0xff]
      %v630 = vld [vmem:[%s1 + $0x40] sm:$0xff]
      %v631 = vld [vmem:[%s1 + $0x48] sm:$0xff]
      %v632 = vld [vmem:[%s1 + $0x50] sm:$0xff]
      %v633 = vld [vmem:[%s1 + $0x58] sm:$0xff]
      %v634 = vld [vmem:[%s1 + $0x60] sm:$0xff]
      %v635 = vld [vmem:[%s1 + $0x68] sm:$0xff]
      %v636 = vld [vmem:[%s1 + $0x70] sm:$0xff]
      %v637 = vld [vmem:[%s1 + $0x78] sm:$0xff]
      %v638 = vld [vmem:[%s1 + $0x80] sm:$0xff]
      %v639 = vld [vmem:[%s1 + $0x88] sm:$0xff]
      %v640 = vld [vmem:[%s1 + $0x90] sm:$0xff]
      %v641 = vld [vmem:[%s1 + $0x98] sm:$0xff]
      %v642 = vld [vmem:[%s1 + $0xa0] sm:$0xff]
      %644 = vset.pattern.permute.xlu0 0
      %645 = vperm.xlu0 %644, %v622
      %v646 = vpop.permute.xlu0 %645
      %649 = vset.pattern.permute.xlu0 0
      %650 = vperm.xlu0 %649, %v623
      %v651 = vpop.permute.xlu0 %650
      %654 = vset.pattern.permute.xlu0 0
      %655 = vperm.xlu0 %654, %v624
      %v656 = vpop.permute.xlu0 %655
      %659 = vset.pattern.permute.xlu0 0
      %660 = vperm.xlu0 %659, %v625
      %v661 = vpop.permute.xlu0 %660
      %664 = vset.pattern.permute.xlu0 0
      %665 = vperm.xlu0 %664, %v626
      %v666 = vpop.permute.xlu0 %665
      %669 = vset.pattern.permute.xlu0 0
      %670 = vperm.xlu0 %669, %v627
      %v671 = vpop.permute.xlu0 %670
      %674 = vset.pattern.permute.xlu0 0
      %675 = vperm.xlu0 %674, %v628
      %v676 = vpop.permute.xlu0 %675
      %679 = vset.pattern.permute.xlu0 0
      %680 = vperm.xlu0 %679, %v629
      %v681 = vpop.permute.xlu0 %680
      %684 = vset.pattern.permute.xlu0 0
      %685 = vperm.xlu0 %684, %v630
      %v686 = vpop.permute.xlu0 %685
      %689 = vset.pattern.permute.xlu0 0
      %690 = vperm.xlu0 %689, %v631
      %v691 = vpop.permute.xlu0 %690
      %694 = vset.pattern.permute.xlu0 0
      %695 = vperm.xlu0 %694, %v632
      %v696 = vpop.permute.xlu0 %695
      %699 = vset.pattern.permute.xlu0 0
      %700 = vperm.xlu0 %699, %v633
      %v701 = vpop.permute.xlu0 %700
      %704 = vset.pattern.permute.xlu0 0
      %705 = vperm.xlu0 %704, %v634
      %v706 = vpop.permute.xlu0 %705
      %709 = vset.pattern.permute.xlu0 0
      %710 = vperm.xlu0 %709, %v635
      %v711 = vpop.permute.xlu0 %710
      %714 = vset.pattern.permute.xlu0 0
      %715 = vperm.xlu0 %714, %v636
      %v716 = vpop.permute.xlu0 %715
      %719 = vset.pattern.permute.xlu0 0
      %720 = vperm.xlu0 %719, %v637
      %v721 = vpop.permute.xlu0 %720
      %724 = vset.pattern.permute.xlu0 0
      %725 = vperm.xlu0 %724, %v638
      %v726 = vpop.permute.xlu0 %725
      %729 = vset.pattern.permute.xlu0 0
      %730 = vperm.xlu0 %729, %v639
      %v731 = vpop.permute.xlu0 %730
      %734 = vset.pattern.permute.xlu0 0
      %735 = vperm.xlu0 %734, %v640
      %v736 = vpop.permute.xlu0 %735
      %739 = vset.pattern.permute.xlu0 0
      %740 = vperm.xlu0 %739, %v641
      %v741 = vpop.permute.xlu0 %740
      %744 = vset.pattern.permute.xlu0 0
      %745 = vperm.xlu0 %744, %v642
      %v746 = vpop.permute.xlu0 %745
      %v748 = vmul.f32 %v601, %v646
      %v749 = vmul.f32 %v602, %v651
      %v750 = vmul.f32 %v603, %v656
      %v751 = vmul.f32 %v604, %v661
      %v752 = vmul.f32 %v605, %v666
      %v753 = vmul.f32 %v606, %v671
      %v754 = vmul.f32 %v607, %v676
      %v755 = vmul.f32 %v608, %v681
      %v756 = vmul.f32 %v609, %v686
      %v757 = vmul.f32 %v610, %v691
      %v758 = vmul.f32 %v611, %v696
      %v759 = vmul.f32 %v612, %v701
      %v760 = vmul.f32 %v613, %v706
      %v761 = vmul.f32 %v614, %v711
      %v762 = vmul.f32 %v615, %v716
      %v763 = vmul.f32 %v616, %v721
      %v764 = vmul.f32 %v617, %v726
      %v765 = vmul.f32 %v618, %v731
      %v766 = vmul.f32 %v619, %v736
      %v767 = vmul.f32 %v620, %v741
      %v768 = vmul.f32 %v621, %v746
      %v769 = vld [vmem:[%s6] sm:$0x1]
      %v771 = vlaneseq
      %v772 = vshrl.u32 %v771, 7
      %v773 = vsub.s32 0, %v772
      %v774 = vrot.slane %v769, %v773
      %775 = vrot.lane.b32.xlu0 %v774, 16
      %v776 = vpop.permute.xlu0 %775
      %v778 = vadd.f32 %v496, %v776
      %v779 = vadd.f32 %v499, %v776
      %v780 = vadd.f32 %v504, %v776
      %v781 = vadd.f32 %v507, %v776
      %v782 = vadd.f32 %v512, %v776
      %v783 = vadd.f32 %v515, %v776
      %v784 = vadd.f32 %v520, %v776
      %v785 = vadd.f32 %v523, %v776
      %v786 = vadd.f32 %v528, %v776
      %v787 = vadd.f32 %v531, %v776
      %v788 = vadd.f32 %v536, %v776
      %v789 = vadd.f32 %v539, %v776
      %v790 = vadd.f32 %v544, %v776
      %v791 = vadd.f32 %v547, %v776
      %v792 = vadd.f32 %v552, %v776
      %v793 = vadd.f32 %v555, %v776
      %v794 = vadd.f32 %v560, %v776
      %v795 = vpack.c.bf16 %v749, %v748
      %v796 = vpack.c.bf16 %v751, %v750
      %v797 = vpack.c.bf16 %v753, %v752
      %v798 = vpack.c.bf16 %v755, %v754
      %v799 = vpack.c.bf16 %v757, %v756
      %v800 = vpack.c.bf16 %v759, %v758
      %v801 = vpack.c.bf16 %v761, %v760
      %v802 = vpack.c.bf16 %v763, %v762
      %v803 = vpack.c.bf16 %v765, %v764
      %v804 = vpack.c.bf16 %v767, %v766
      %805 = vst.msk [vmem:[#allocation2] sm:$0xff] %vm419, %v795
      %806 = vst.msk [vmem:[#allocation2 + $0x8] sm:$0xff] %vm419, %v796
      %807 = vst.msk [vmem:[#allocation2 + $0x10] sm:$0xff] %vm419, %v797
      %808 = vst.msk [vmem:[#allocation2 + $0x18] sm:$0xff] %vm419, %v798
      %809 = vst.msk [vmem:[#allocation2 + $0x20] sm:$0xff] %vm419, %v799
      %810 = vst.msk [vmem:[#allocation2 + $0x28] sm:$0xff] %vm419, %v800
      %811 = vst.msk [vmem:[#allocation2 + $0x30] sm:$0xff] %vm419, %v801
      %812 = vst.msk [vmem:[#allocation2 + $0x38] sm:$0xff] %vm419, %v802
      %813 = vst.msk [vmem:[#allocation2 + $0x40] sm:$0xff] %vm419, %v803
      %814 = vst.msk [vmem:[#allocation2 + $0x48] sm:$0xff] %vm419, %v804
      %v815 = vpack.c.bf16 %v768, %v768
      %vm816 = vsmask.f32 7424
      %v818 = vshrl.u32 %v795, 16
      %v820 = vshll.u32 %v795, 16
      %v822 = vrot.slane %v820, 1
      %v823 = vor.u32 %v818, %v822
      %v825 = vshll.u32 %v796, 16
      %v827 = vrot.slane %v825, 1
      %v828 = vsel %vm816, %v823, %v827
      %v829 = vshrl.u32 %v796, 16
      %v831 = vor.u32 %v829, %v827
      %v833 = vshll.u32 %v797, 16
      %v835 = vrot.slane %v833, 1
      %v836 = vsel %vm816, %v831, %v835
      %v837 = vshrl.u32 %v797, 16
      %v839 = vor.u32 %v837, %v835
      %v841 = vshll.u32 %v798, 16
      %v843 = vrot.slane %v841, 1
      %v844 = vsel %vm816, %v839, %v843
      %v845 = vshrl.u32 %v798, 16
      %v847 = vor.u32 %v845, %v843
      %v849 = vshll.u32 %v799, 16
      %v851 = vrot.slane %v849, 1
      %v852 = vsel %vm816, %v847, %v851
      %v853 = vshrl.u32 %v799, 16
      %v855 = vor.u32 %v853, %v851
      %v857 = vshll.u32 %v800, 16
      %v859 = vrot.slane %v857, 1
      %v860 = vsel %vm816, %v855, %v859
      %v861 = vshrl.u32 %v800, 16
      %v863 = vor.u32 %v861, %v859
      %v865 = vshll.u32 %v801, 16
      %v867 = vrot.slane %v865, 1
      %v868 = vsel %vm816, %v863, %v867
      %v869 = vshrl.u32 %v801, 16
      %v871 = vor.u32 %v869, %v867
      %v873 = vshll.u32 %v802, 16
      %v875 = vrot.slane %v873, 1
      %v876 = vsel %vm816, %v871, %v875
      %v877 = vshrl.u32 %v802, 16
      %v879 = vor.u32 %v877, %v875
      %v881 = vshll.u32 %v803, 16
      %v883 = vrot.slane %v881, 1
      %v884 = vsel %vm816, %v879, %v883
      %v885 = vshrl.u32 %v803, 16
      %v887 = vor.u32 %v885, %v883
      %v889 = vshll.u32 %v804, 16
      %v891 = vrot.slane %v889, 1
      %v892 = vsel %vm816, %v887, %v891
      %v893 = vshrl.u32 %v804, 16
      %v895 = vor.u32 %v893, %v891
      %v897 = vshll.u32 %v815, 16
      %v899 = vrot.slane %v897, 1
      %v900 = vsel %vm816, %v895, %v899
      %s911 = scalar_lea.vmem [#allocation2], 80
      %912 = vst.msk [vmem:[%s911] sm:$0xff] %vm419, %v828
      %913 = vst.msk [vmem:[%s911 + $0x8] sm:$0xff] %vm419, %v836
      %914 = vst.msk [vmem:[%s911 + $0x10] sm:$0xff] %vm419, %v844
      %915 = vst.msk [vmem:[%s911 + $0x18] sm:$0xff] %vm419, %v852
      %916 = vst.msk [vmem:[%s911 + $0x20] sm:$0xff] %vm419, %v860
      %917 = vst.msk [vmem:[%s911 + $0x28] sm:$0xff] %vm419, %v868
      %918 = vst.msk [vmem:[%s911 + $0x30] sm:$0xff] %vm419, %v876
      %919 = vst.msk [vmem:[%s911 + $0x38] sm:$0xff] %vm419, %v884
      %920 = vst.msk [vmem:[%s911 + $0x40] sm:$0xff] %vm419, %v892
      %921 = vst.msk [vmem:[%s911 + $0x48] sm:$0xff] %vm419, %v900
      %vm933 = vcmask 1046528
      %v934 = vrot.slane %v795, 1
      %v935 = vrot.slane %v796, 1
      %v936 = vsel %vm933, %v934, %v935
      %v937 = vrot.slane %v797, 1
      %v938 = vsel %vm933, %v935, %v937
      %v939 = vrot.slane %v798, 1
      %v940 = vsel %vm933, %v937, %v939
      %v941 = vrot.slane %v799, 1
      %v942 = vsel %vm933, %v939, %v941
      %v943 = vrot.slane %v800, 1
      %v944 = vsel %vm933, %v941, %v943
      %v945 = vrot.slane %v801, 1
      %v946 = vsel %vm933, %v943, %v945
      %v947 = vrot.slane %v802, 1
      %v948 = vsel %vm933, %v945, %v947
      %v949 = vrot.slane %v803, 1
      %v950 = vsel %vm933, %v947, %v949
      %v951 = vrot.slane %v804, 1
      %v952 = vsel %vm933, %v949, %v951
      %v953 = vrot.slane %v815, 1
      %v954 = vsel %vm933, %v951, %v953
      %s965 = scalar_lea.vmem [#allocation2], 160
      %966 = vst.msk [vmem:[%s965] sm:$0xff] %vm419, %v936
      %967 = vst.msk [vmem:[%s965 + $0x8] sm:$0xff] %vm419, %v938
      %968 = vst.msk [vmem:[%s965 + $0x10] sm:$0xff] %vm419, %v940
      %969 = vst.msk [vmem:[%s965 + $0x18] sm:$0xff] %vm419, %v942
      %970 = vst.msk [vmem:[%s965 + $0x20] sm:$0xff] %vm419, %v944
      %971 = vst.msk [vmem:[%s965 + $0x28] sm:$0xff] %vm419, %v946
      %972 = vst.msk [vmem:[%s965 + $0x30] sm:$0xff] %vm419, %v948
      %973 = vst.msk [vmem:[%s965 + $0x38] sm:$0xff] %vm419, %v950
      %974 = vst.msk [vmem:[%s965 + $0x40] sm:$0xff] %vm419, %v952
      %975 = vst.msk [vmem:[%s965 + $0x48] sm:$0xff] %vm419, %v954
      %v976 = vld [vmem:[#allocation2] sm:$0xff]
      %v977 = vld [vmem:[#allocation2 + $0x8] sm:$0xff]
      %v978 = vld [vmem:[#allocation2 + $0x10] sm:$0xff]
      %v979 = vld [vmem:[#allocation2 + $0x18] sm:$0xff]
      %v980 = vld [vmem:[#allocation2 + $0x20] sm:$0xff]
      %v981 = vld [vmem:[#allocation2 + $0x28] sm:$0xff]
      %v982 = vld [vmem:[#allocation2 + $0x30] sm:$0xff]
      %v983 = vld [vmem:[#allocation2 + $0x38] sm:$0xff]
      %v984 = vld [vmem:[%s3] sm:$0xf]
      %v985 = vld [vmem:[%s3 + $0x4] sm:$0xf]
      %v986 = vld [vmem:[%s911] sm:$0xff]
      %v987 = vld [vmem:[%s911 + $0x8] sm:$0xff]
      %v988 = vld [vmem:[%s911 + $0x10] sm:$0xff]
      %v989 = vld [vmem:[%s911 + $0x18] sm:$0xff]
      %v990 = vld [vmem:[%s911 + $0x20] sm:$0xff]
      %v991 = vld [vmem:[%s911 + $0x28] sm:$0xff]
      %v992 = vld [vmem:[%s911 + $0x30] sm:$0xff]
      %v993 = vld [vmem:[%s911 + $0x38] sm:$0xff]
      %s994 = scalar_lea.vmem %s3, 8
      %v995 = vld [vmem:[%s994] sm:$0xf]
      %v996 = vld [vmem:[%s994 + $0x4] sm:$0xf]
      %v999 = vunpack.c.l.b16 %v995
      %v1000 = vunpack.c.l.b16 %v996
      %v1001 = vpack.c.b16 %v1000, %v999
      %v1004 = vsel %vm419, %v986, 0
      %v1007 = vsel %vm419, %v987, 0
      %v1010 = vsel %vm419, %v988, 0
      %v1013 = vsel %vm419, %v989, 0
      %v1016 = vsel %vm419, %v990, 0
      %v1019 = vsel %vm419, %v991, 0
      %v1022 = vsel %vm419, %v992, 0
      %v1025 = vsel %vm419, %v993, 0
      %1027 = vmatprep.subr.bf16.mxu0 0
      %1028 = vmatpush1.bf16.msra.mxu0 %v1001
      %1029 = vmatprep.subr.bf16.mxu0 0
      %1030 = vmatpush1.bf16.msra.mxu0 0
      %1031 = vmatprep.subr.bf16.mxu0 0
      %1032 = vmatpush1.bf16.msra.mxu0 0
      %1033 = vmatprep.subr.bf16.mxu0 0
      %1034 = vmatpush1.bf16.msra.mxu0 0
      %1035 = vmatprep.subr.bf16.mxu0 0
      %1036 = vmatpush1.bf16.msra.mxu0 0
      %1037 = vmatprep.subr.bf16.mxu0 0
      %1038 = vmatpush1.bf16.msra.mxu0 0
      %1039 = vmatprep.subr.bf16.mxu0 0
      %1040 = vmatpush1.bf16.msra.mxu0 0
      %1041 = vmatprep.subr.bf16.mxu0 0
      %1042 = vmatpush1.bf16.msra.mxu0 0
      %1043 = vmatprep.subr.bf16.mxu0 0
      %1044 = vmatpush1.bf16.msra.mxu0 0
      %1045 = vmatprep.subr.bf16.mxu0 0
      %1046 = vmatpush1.bf16.msra.mxu0 0
      %1047 = vmatprep.subr.bf16.mxu0 0
      %1048 = vmatpush1.bf16.msra.mxu0 0
      %1049 = vmatprep.subr.bf16.mxu0 0
      %1050 = vmatpush1.bf16.msra.mxu0 0
      %1051 = vmatprep.subr.bf16.mxu0 0
      %1052 = vmatpush1.bf16.msra.mxu0 0
      %1053 = vmatprep.subr.bf16.mxu0 0
      %1054 = vmatpush1.bf16.msra.mxu0 0
      %1055 = vmatprep.subr.bf16.mxu0 0
      %1056 = vmatpush1.bf16.msra.mxu0 0
      %1057 = vmatprep.subr.bf16.mxu0 0
      %1058 = vmatpush1.bf16.msra.mxu0 0
      %1059 = vmatprep.mubr.bf16.mxu0 0
      %1060 = vmatmul.mubr.bf16.gmra.mrb[0].mxu0 %v1004
      %v1061 = vpop.f32.mrb[0].mxu0
      %v1062 = vadd.f32 0.0, %v1061
      %v1063 = vpop.f32.mrb[0].mxu0
      %v1064 = vpop.f32.mrb[0].mxu0
      %v1065 = vadd.f32 0.0, %v1064
      %v1066 = vpop.f32.mrb[0].mxu0
      %1067 = vmatprep.mubr.bf16.mxu0 0
      %1068 = vmatmul.mubr.bf16.gmra.mrb[0].mxu0 %v1007
      %v1069 = vpop.f32.mrb[0].mxu0
      %v1070 = vadd.f32 0.0, %v1069
      %v1071 = vpop.f32.mrb[0].mxu0
      %v1072 = vpop.f32.mrb[0].mxu0
      %v1073 = vadd.f32 0.0, %v1072
      %v1074 = vpop.f32.mrb[0].mxu0
      %1075 = vmatprep.mubr.bf16.mxu0 0
      %1076 = vmatmul.mubr.bf16.gmra.mrb[0].mxu0 %v1010
      %v1077 = vpop.f32.mrb[0].mxu0
      %v1078 = vadd.f32 0.0, %v1077
      %v1079 = vpop.f32.mrb[0].mxu0
      %v1080 = vpop.f32.mrb[0].mxu0
      %v1081 = vadd.f32 0.0, %v1080
      %v1082 = vpop.f32.mrb[0].mxu0
      %1083 = vmatprep.mubr.bf16.mxu0 0
      %1084 = vmatmul.mubr.bf16.gmra.mrb[0].mxu0 %v1013
      %v1085 = vpop.f32.mrb[0].mxu0
      %v1086 = vadd.f32 0.0, %v1085
      %v1087 = vpop.f32.mrb[0].mxu0
      %v1088 = vpop.f32.mrb[0].mxu0
      %v1089 = vadd.f32 0.0, %v1088
      %v1090 = vpop.f32.mrb[0].mxu0
      %1091 = vmatprep.mubr.bf16.mxu0 0
      %1092 = vmatmul.mubr.bf16.gmra.mrb[0].mxu0 %v1016
      %v1093 = vpop.f32.mrb[0].mxu0
      %v1094 = vadd.f32 0.0, %v1093
      %v1095 = vpop.f32.mrb[0].mxu0
      %v1096 = vpop.f32.mrb[0].mxu0
      %v1097 = vadd.f32 0.0, %v1096
      %v1098 = vpop.f32.mrb[0].mxu0
      %1099 = vmatprep.mubr.bf16.mxu0 0
      %1100 = vmatmul.mubr.bf16.gmra.mrb[0].mxu0 %v1019
      %v1101 = vpop.f32.mrb[0].mxu0
      %v1102 = vadd.f32 0.0, %v1101
      %v1103 = vpop.f32.mrb[0].mxu0
      %v1104 = vpop.f32.mrb[0].mxu0
      %v1105 = vadd.f32 0.0, %v1104
      %v1106 = vpop.f32.mrb[0].mxu0
      %1107 = vmatprep.mubr.bf16.mxu0 0
      %1108 = vmatmul.mubr.bf16.gmra.mrb[0].mxu0 %v1022
      %v1109 = vpop.f32.mrb[0].mxu0
      %v1110 = vadd.f32 0.0, %v1109
      %v1111 = vpop.f32.mrb[0].mxu0
      %v1112 = vpop.f32.mrb[0].mxu0
      %v1113 = vadd.f32 0.0, %v1112
      %v1114 = vpop.f32.mrb[0].mxu0
      %1115 = vmatprep.mubr.bf16.mxu0 0
      %1116 = vmatmul.mubr.bf16.gmra.mrb[0].mxu0 %v1025
      %v1117 = vpop.f32.mrb[0].mxu0
      %v1118 = vadd.f32 0.0, %v1117
      %v1119 = vpop.f32.mrb[0].mxu0
      %v1120 = vpop.f32.mrb[0].mxu0
      %v1121 = vadd.f32 0.0, %v1120
      %v1122 = vpop.f32.mrb[0].mxu0
      %1123 = vdwg.mxu0
      %v1126 = vunpack.c.l.b16 %v984
      %v1127 = vunpack.c.l.b16 %v985
      %v1128 = vpack.c.b16 %v1127, %v1126
      %v1131 = vsel %vm419, %v976, 0
      %v1134 = vsel %vm419, %v977, 0
      %v1137 = vsel %vm419, %v978, 0
      %v1140 = vsel %vm419, %v979, 0
      %v1143 = vsel %vm419, %v980, 0
      %v1146 = vsel %vm419, %v981, 0
      %v1149 = vsel %vm419, %v982, 0
      %v1152 = vsel %vm419, %v983, 0
      %1154 = vmatprep.subr.bf16.mxu0 0
      %1155 = vmatpush1.bf16.msra.mxu0 %v1128
      %1156 = vmatprep.subr.bf16.mxu0 0
      %1157 = vmatpush1.bf16.msra.mxu0 0
      %1158 = vmatprep.subr.bf16.mxu0 0
      %1159 = vmatpush1.bf16.msra.mxu0 0
      %1160 = vmatprep.subr.bf16.mxu0 0
      %1161 = vmatpush1.bf16.msra.mxu0 0
      %1162 = vmatprep.subr.bf16.mxu0 0
      %1163 = vmatpush1.bf16.msra.mxu0 0
      %1164 = vmatprep.subr.bf16.mxu0 0
      %1165 = vmatpush1.bf16.msra.mxu0 0
      %1166 = vmatprep.subr.bf16.mxu0 0
      %1167 = vmatpush1.bf16.msra.mxu0 0
      %1168 = vmatprep.subr.bf16.mxu0 0
      %1169 = vmatpush1.bf16.msra.mxu0 0
      %1170 = vmatprep.subr.bf16.mxu0 0
      %1171 = vmatpush1.bf16.msra.mxu0 0
      %1172 = vmatprep.subr.bf16.mxu0 0
      %1173 = vmatpush1.bf16.msra.mxu0 0
      %1174 = vmatprep.subr.bf16.mxu0 0
      %1175 = vmatpush1.bf16.msra.mxu0 0
      %1176 = vmatprep.subr.bf16.mxu0 0
      %1177 = vmatpush1.bf16.msra.mxu0 0
      %1178 = vmatprep.subr.bf16.mxu0 0
      %1179 = vmatpush1.bf16.msra.mxu0 0
      %1180 = vmatprep.subr.bf16.mxu0 0
      %1181 = vmatpush1.bf16.msra.mxu0 0
      %1182 = vmatprep.subr.bf16.mxu0 0
      %1183 = vmatpush1.bf16.msra.mxu0 0
      %1184 = vmatprep.subr.bf16.mxu0 0
      %1185 = vmatpush1.bf16.msra.mxu0 0
      %1186 = vmatprep.mubr.bf16.mxu0 0
      %1187 = vmatmul.mubr.bf16.gmra.mrb[0].mxu0 %v1131
      %v1188 = vpop.f32.mrb[0].mxu0
      %v1189 = vadd.f32 %v1062, %v1188
      %v1190 = vpop.f32.mrb[0].mxu0
      %v1191 = vpop.f32.mrb[0].mxu0
      %v1192 = vadd.f32 %v1065, %v1191
      %v1193 = vpop.f32.mrb[0].mxu0
      %1194 = vmatprep.mubr.bf16.mxu0 0
      %1195 = vmatmul.mubr.bf16.gmra.mrb[0].mxu0 %v1134
      %v1196 = vpop.f32.mrb[0].mxu0
      %v1197 = vadd.f32 %v1070, %v1196
      %v1198 = vpop.f32.mrb[0].mxu0
      %v1199 = vpop.f32.mrb[0].mxu0
      %v1200 = vadd.f32 %v1073, %v1199
      %v1201 = vpop.f32.mrb[0].mxu0
      %1202 = vmatprep.mubr.bf16.mxu0 0
      %1203 = vmatmul.mubr.bf16.gmra.mrb[0].mxu0 %v1137
      %v1204 = vpop.f32.mrb[0].mxu0
      %v1205 = vadd.f32 %v1078, %v1204
      %v1206 = vpop.f32.mrb[0].mxu0
      %v1207 = vpop.f32.mrb[0].mxu0
      %v1208 = vadd.f32 %v1081, %v1207
      %v1209 = vpop.f32.mrb[0].mxu0
      %1210 = vmatprep.mubr.bf16.mxu0 0
      %1211 = vmatmul.mubr.bf16.gmra.mrb[0].mxu0 %v1140
      %v1212 = vpop.f32.mrb[0].mxu0
      %v1213 = vadd.f32 %v1086, %v1212
      %v1214 = vpop.f32.mrb[0].mxu0
      %v1215 = vpop.f32.mrb[0].mxu0
      %v1216 = vadd.f32 %v1089, %v1215
      %v1217 = vpop.f32.mrb[0].mxu0
      %1218 = vmatprep.mubr.bf16.mxu0 0
      %1219 = vmatmul.mubr.bf16.gmra.mrb[0].mxu0 %v1143
      %v1220 = vpop.f32.mrb[0].mxu0
      %v1221 = vadd.f32 %v1094, %v1220
      %v1222 = vpop.f32.mrb[0].mxu0
      %v1223 = vpop.f32.mrb[0].mxu0
      %v1224 = vadd.f32 %v1097, %v1223
      %v1225 = vpop.f32.mrb[0].mxu0
      %1226 = vmatprep.mubr.bf16.mxu0 0
      %1227 = vmatmul.mubr.bf16.gmra.mrb[0].mxu0 %v1146
      %v1228 = vpop.f32.mrb[0].mxu0
      %v1229 = vadd.f32 %v1102, %v1228
      %v1230 = vpop.f32.mrb[0].mxu0
      %v1231 = vpop.f32.mrb[0].mxu0
      %v1232 = vadd.f32 %v1105, %v1231
      %v1233 = vpop.f32.mrb[0].mxu0
      %1234 = vmatprep.mubr.bf16.mxu0 0
      %1235 = vmatmul.mubr.bf16.gmra.mrb[0].mxu0 %v1149
      %v1236 = vpop.f32.mrb[0].mxu0
      %v1237 = vadd.f32 %v1110, %v1236
      %v1238 = vpop.f32.mrb[0].mxu0
      %v1239 = vpop.f32.mrb[0].mxu0
      %v1240 = vadd.f32 %v1113, %v1239
      %v1241 = vpop.f32.mrb[0].mxu0
      %1242 = vmatprep.mubr.bf16.mxu0 0
      %1243 = vmatmul.mubr.bf16.gmra.mrb[0].mxu0 %v1152
      %v1244 = vpop.f32.mrb[0].mxu0
      %v1245 = vadd.f32 %v1118, %v1244
      %v1246 = vpop.f32.mrb[0].mxu0
      %v1247 = vpop.f32.mrb[0].mxu0
      %v1248 = vadd.f32 %v1121, %v1247
      %v1249 = vpop.f32.mrb[0].mxu0
      %1250 = vdwg.mxu0
      %v1251 = vld [vmem:[%s965] sm:$0xff]
      %v1252 = vld [vmem:[%s965 + $0x8] sm:$0xff]
      %v1253 = vld [vmem:[%s965 + $0x10] sm:$0xff]
      %v1254 = vld [vmem:[%s965 + $0x18] sm:$0xff]
      %v1255 = vld [vmem:[%s965 + $0x20] sm:$0xff]
      %v1256 = vld [vmem:[%s965 + $0x28] sm:$0xff]
      %v1257 = vld [vmem:[%s965 + $0x30] sm:$0xff]
      %v1258 = vld [vmem:[%s965 + $0x38] sm:$0xff]
      %s1259 = scalar_lea.vmem %s3, 16
      %v1260 = vld [vmem:[%s1259] sm:$0xf]
      %v1261 = vld [vmem:[%s1259 + $0x4] sm:$0xf]
      %v1264 = vunpack.c.l.b16 %v1260
      %v1265 = vunpack.c.l.b16 %v1261
      %v1266 = vpack.c.b16 %v1265, %v1264
      %v1269 = vsel %vm419, %v1251, 0
      %v1272 = vsel %vm419, %v1252, 0
      %v1275 = vsel %vm419, %v1253, 0
      %v1278 = vsel %vm419, %v1254, 0
      %v1281 = vsel %vm419, %v1255, 0
      %v1284 = vsel %vm419, %v1256, 0
      %v1287 = vsel %vm419, %v1257, 0
      %v1290 = vsel %vm419, %v1258, 0
      %1292 = vmatprep.subr.bf16.mxu0 0
      %1293 = vmatpush1.bf16.msra.mxu0 %v1266
      %1294 = vmatprep.subr.bf16.mxu0 0
      %1295 = vmatpush1.bf16.msra.mxu0 0
      %1296 = vmatprep.subr.bf16.mxu0 0
      %1297 = vmatpush1.bf16.msra.mxu0 0
      %1298 = vmatprep.subr.bf16.mxu0 0
      %1299 = vmatpush1.bf16.msra.mxu0 0
      %1300 = vmatprep.subr.bf16.mxu0 0
      %1301 = vmatpush1.bf16.msra.mxu0 0
      %1302 = vmatprep.subr.bf16.mxu0 0
      %1303 = vmatpush1.bf16.msra.mxu0 0
      %1304 = vmatprep.subr.bf16.mxu0 0
      %1305 = vmatpush1.bf16.msra.mxu0 0
      %1306 = vmatprep.subr.bf16.mxu0 0
      %1307 = vmatpush1.bf16.msra.mxu0 0
      %1308 = vmatprep.subr.bf16.mxu0 0
      %1309 = vmatpush1.bf16.msra.mxu0 0
      %1310 = vmatprep.subr.bf16.mxu0 0
      %1311 = vmatpush1.bf16.msra.mxu0 0
      %1312 = vmatprep.subr.bf16.mxu0 0
      %1313 = vmatpush1.bf16.msra.mxu0 0
      %1314 = vmatprep.subr.bf16.mxu0 0
      %1315 = vmatpush1.bf16.msra.mxu0 0
      %1316 = vmatprep.subr.bf16.mxu0 0
      %1317 = vmatpush1.bf16.msra.mxu0 0
      %1318 = vmatprep.subr.bf16.mxu0 0
      %1319 = vmatpush1.bf16.msra.mxu0 0
      %1320 = vmatprep.subr.bf16.mxu0 0
      %1321 = vmatpush1.bf16.msra.mxu0 0
      %1322 = vmatprep.subr.bf16.mxu0 0
      %1323 = vmatpush1.bf16.msra.mxu0 0
      %1324 = vmatprep.mubr.bf16.mxu0 0
      %1325 = vmatmul.mubr.bf16.gmra.mrb[0].mxu0 %v1269
      %v1326 = vpop.f32.mrb[0].mxu0
      %v1327 = vadd.f32 0.0, %v1326
      %v1328 = vpop.f32.mrb[0].mxu0
      %v1329 = vpop.f32.mrb[0].mxu0
      %v1330 = vadd.f32 0.0, %v1329
      %v1331 = vpop.f32.mrb[0].mxu0
      %1332 = vmatprep.mubr.bf16.mxu0 0
      %1333 = vmatmul.mubr.bf16.gmra.mrb[0].mxu0 %v1272
      %v1334 = vpop.f32.mrb[0].mxu0
      %v1335 = vadd.f32 0.0, %v1334
      %v1336 = vpop.f32.mrb[0].mxu0
      %v1337 = vpop.f32.mrb[0].mxu0
      %v1338 = vadd.f32 0.0, %v1337
      %v1339 = vpop.f32.mrb[0].mxu0
      %1340 = vmatprep.mubr.bf16.mxu0 0
      %1341 = vmatmul.mubr.bf16.gmra.mrb[0].mxu0 %v1275
      %v1342 = vpop.f32.mrb[0].mxu0
      %v1343 = vadd.f32 0.0, %v1342
      %v1344 = vpop.f32.mrb[0].mxu0
      %v1345 = vpop.f32.mrb[0].mxu0
      %v1346 = vadd.f32 0.0, %v1345
      %v1347 = vpop.f32.mrb[0].mxu0
      %1348 = vmatprep.mubr.bf16.mxu0 0
      %1349 = vmatmul.mubr.bf16.gmra.mrb[0].mxu0 %v1278
      %v1350 = vpop.f32.mrb[0].mxu0
      %v1351 = vadd.f32 0.0, %v1350
      %v1352 = vpop.f32.mrb[0].mxu0
      %v1353 = vpop.f32.mrb[0].mxu0
      %v1354 = vadd.f32 0.0, %v1353
      %v1355 = vpop.f32.mrb[0].mxu0
      %1356 = vmatprep.mubr.bf16.mxu0 0
      %1357 = vmatmul.mubr.bf16.gmra.mrb[0].mxu0 %v1281
      %v1358 = vpop.f32.mrb[0].mxu0
      %v1359 = vadd.f32 0.0, %v1358
      %v1360 = vpop.f32.mrb[0].mxu0
      %v1361 = vpop.f32.mrb[0].mxu0
      %v1362 = vadd.f32 0.0, %v1361
      %v1363 = vpop.f32.mrb[0].mxu0
      %1364 = vmatprep.mubr.bf16.mxu0 0
      %1365 = vmatmul.mubr.bf16.gmra.mrb[0].mxu0 %v1284
      %v1366 = vpop.f32.mrb[0].mxu0
      %v1367 = vadd.f32 0.0, %v1366
      %v1368 = vpop.f32.mrb[0].mxu0
      %v1369 = vpop.f32.mrb[0].mxu0
      %v1370 = vadd.f32 0.0, %v1369
      %v1371 = vpop.f32.mrb[0].mxu0
      %1372 = vmatprep.mubr.bf16.mxu0 0
      %1373 = vmatmul.mubr.bf16.gmra.mrb[0].mxu0 %v1287
      %v1374 = vpop.f32.mrb[0].mxu0
      %v1375 = vadd.f32 0.0, %v1374
      %v1376 = vpop.f32.mrb[0].mxu0
      %v1377 = vpop.f32.mrb[0].mxu0
      %v1378 = vadd.f32 0.0, %v1377
      %v1379 = vpop.f32.mrb[0].mxu0
      %1380 = vmatprep.mubr.bf16.mxu0 0
      %1381 = vmatmul.mubr.bf16.gmra.mrb[0].mxu0 %v1290
      %v1382 = vpop.f32.mrb[0].mxu0
      %v1383 = vadd.f32 0.0, %v1382
      %v1384 = vpop.f32.mrb[0].mxu0
      %v1385 = vpop.f32.mrb[0].mxu0
      %v1386 = vadd.f32 0.0, %v1385
      %v1387 = vpop.f32.mrb[0].mxu0
      %1388 = vdwg.mxu0
      %v1389 = vadd.f32 %v1189, %v1327
      %v1390 = vadd.f32 %v1192, %v1330
      %v1391 = vadd.f32 %v1197, %v1335
      %v1392 = vadd.f32 %v1200, %v1338
      %v1393 = vadd.f32 %v1205, %v1343
      %v1394 = vadd.f32 %v1208, %v1346
      %v1395 = vadd.f32 %v1213, %v1351
      %v1396 = vadd.f32 %v1216, %v1354
      %v1397 = vadd.f32 %v1221, %v1359
      %v1398 = vadd.f32 %v1224, %v1362
      %v1399 = vadd.f32 %v1229, %v1367
      %v1400 = vadd.f32 %v1232, %v1370
      %v1401 = vadd.f32 %v1237, %v1375
      %v1402 = vadd.f32 %v1240, %v1378
      %v1403 = vadd.f32 %v1245, %v1383
      %v1404 = vadd.f32 %v1248, %v1386
      %v1405 = vld [vmem:[#allocation2 + $0x8] sm:$0xff]
      %v1406 = vld [vmem:[#allocation2 + $0x10] sm:$0xff]
      %v1407 = vld [vmem:[#allocation2 + $0x18] sm:$0xff]
      %v1408 = vld [vmem:[#allocation2 + $0x20] sm:$0xff]
      %v1409 = vld [vmem:[#allocation2 + $0x28] sm:$0xff]
      %v1410 = vld [vmem:[#allocation2 + $0x30] sm:$0xff]
      %v1411 = vld [vmem:[#allocation2 + $0x38] sm:$0xff]
      %v1412 = vld [vmem:[#allocation2 + $0x40] sm:$0xff]
      %s1413 = scalar_lea.vmem %s3, 24
      %v1414 = vld [vmem:[%s1413] sm:$0xf]
      %v1415 = vld [vmem:[%s1413 + $0x4] sm:$0xf]
      %v1418 = vunpack.c.l.b16 %v1414
      %v1419 = vunpack.c.l.b16 %v1415
      %v1420 = vpack.c.b16 %v1419, %v1418
      %v1423 = vsel %vm419, %v1405, 0
      %v1426 = vsel %vm419, %v1406, 0
      %v1429 = vsel %vm419, %v1407, 0
      %v1432 = vsel %vm419, %v1408, 0
      %v1435 = vsel %vm419, %v1409, 0
      %v1438 = vsel %vm419, %v1410, 0
      %v1441 = vsel %vm419, %v1411, 0
      %v1444 = vsel %vm419, %v1412, 0
      %1446 = vmatprep.subr.bf16.mxu0 0
      %1447 = vmatpush1.bf16.msra.mxu0 %v1420
      %1448 = vmatprep.subr.bf16.mxu0 0
      %1449 = vmatpush1.bf16.msra.mxu0 0
      %1450 = vmatprep.subr.bf16.mxu0 0
      %1451 = vmatpush1.bf16.msra.mxu0 0
      %1452 = vmatprep.subr.bf16.mxu0 0
      %1453 = vmatpush1.bf16.msra.mxu0 0
      %1454 = vmatprep.subr.bf16.mxu0 0
      %1455 = vmatpush1.bf16.msra.mxu0 0
      %1456 = vmatprep.subr.bf16.mxu0 0
      %1457 = vmatpush1.bf16.msra.mxu0 0
      %1458 = vmatprep.subr.bf16.mxu0 0
      %1459 = vmatpush1.bf16.msra.mxu0 0
      %1460 = vmatprep.subr.bf16.mxu0 0
      %1461 = vmatpush1.bf16.msra.mxu0 0
      %1462 = vmatprep.subr.bf16.mxu0 0
      %1463 = vmatpush1.bf16.msra.mxu0 0
      %1464 = vmatprep.subr.bf16.mxu0 0
      %1465 = vmatpush1.bf16.msra.mxu0 0
      %1466 = vmatprep.subr.bf16.mxu0 0
      %1467 = vmatpush1.bf16.msra.mxu0 0
      %1468 = vmatprep.subr.bf16.mxu0 0
      %1469 = vmatpush1.bf16.msra.mxu0 0
      %1470 = vmatprep.subr.bf16.mxu0 0
      %1471 = vmatpush1.bf16.msra.mxu0 0
      %1472 = vmatprep.subr.bf16.mxu0 0
      %1473 = vmatpush1.bf16.msra.mxu0 0
      %1474 = vmatprep.subr.bf16.mxu0 0
      %1475 = vmatpush1.bf16.msra.mxu0 0
      %1476 = vmatprep.subr.bf16.mxu0 0
      %1477 = vmatpush1.bf16.msra.mxu0 0
      %1478 = vmatprep.mubr.bf16.mxu0 0
      %1479 = vmatmul.mubr.bf16.gmra.mrb[0].mxu0 %v1423
      %v1480 = vpop.f32.mrb[0].mxu0
      %v1481 = vadd.f32 0.0, %v1480
      %v1482 = vpop.f32.mrb[0].mxu0
      %v1483 = vpop.f32.mrb[0].mxu0
      %v1484 = vadd.f32 0.0, %v1483
      %v1485 = vpop.f32.mrb[0].mxu0
      %1486 = vmatprep.mubr.bf16.mxu0 0
      %1487 = vmatmul.mubr.bf16.gmra.mrb[0].mxu0 %v1426
      %v1488 = vpop.f32.mrb[0].mxu0
      %v1489 = vadd.f32 0.0, %v1488
      %v1490 = vpop.f32.mrb[0].mxu0
      %v1491 = vpop.f32.mrb[0].mxu0
      %v1492 = vadd.f32 0.0, %v1491
      %v1493 = vpop.f32.mrb[0].mxu0
      %1494 = vmatprep.mubr.bf16.mxu0 0
      %1495 = vmatmul.mubr.bf16.gmra.mrb[0].mxu0 %v1429
      %v1496 = vpop.f32.mrb[0].mxu0
      %v1497 = vadd.f32 0.0, %v1496
      %v1498 = vpop.f32.mrb[0].mxu0
      %v1499 = vpop.f32.mrb[0].mxu0
      %v1500 = vadd.f32 0.0, %v1499
      %v1501 = vpop.f32.mrb[0].mxu0
      %1502 = vmatprep.mubr.bf16.mxu0 0
      %1503 = vmatmul.mubr.bf16.gmra.mrb[0].mxu0 %v1432
      %v1504 = vpop.f32.mrb[0].mxu0
      %v1505 = vadd.f32 0.0, %v1504
      %v1506 = vpop.f32.mrb[0].mxu0
      %v1507 = vpop.f32.mrb[0].mxu0
      %v1508 = vadd.f32 0.0, %v1507
      %v1509 = vpop.f32.mrb[0].mxu0
      %1510 = vmatprep.mubr.bf16.mxu0 0
      %1511 = vmatmul.mubr.bf16.gmra.mrb[0].mxu0 %v1435
      %v1512 = vpop.f32.mrb[0].mxu0
      %v1513 = vadd.f32 0.0, %v1512
      %v1514 = vpop.f32.mrb[0].mxu0
      %v1515 = vpop.f32.mrb[0].mxu0
      %v1516 = vadd.f32 0.0, %v1515
      %v1517 = vpop.f32.mrb[0].mxu0
      %1518 = vmatprep.mubr.bf16.mxu0 0
      %1519 = vmatmul.mubr.bf16.gmra.mrb[0].mxu0 %v1438
      %v1520 = vpop.f32.mrb[0].mxu0
      %v1521 = vadd.f32 0.0, %v1520
      %v1522 = vpop.f32.mrb[0].mxu0
      %v1523 = vpop.f32.mrb[0].mxu0
      %v1524 = vadd.f32 0.0, %v1523
      %v1525 = vpop.f32.mrb[0].mxu0
      %1526 = vmatprep.mubr.bf16.mxu0 0
      %1527 = vmatmul.mubr.bf16.gmra.mrb[0].mxu0 %v1441
      %v1528 = vpop.f32.mrb[0].mxu0
      %v1529 = vadd.f32 0.0, %v1528
      %v1530 = vpop.f32.mrb[0].mxu0
      %v1531 = vpop.f32.mrb[0].mxu0
      %v1532 = vadd.f32 0.0, %v1531
      %v1533 = vpop.f32.mrb[0].mxu0
      %1534 = vmatprep.mubr.bf16.mxu0 0
      %1535 = vmatmul.mubr.bf16.gmra.mrb[0].mxu0 %v1444
      %v1536 = vpop.f32.mrb[0].mxu0
      %v1537 = vadd.f32 0.0, %v1536
      %v1538 = vpop.f32.mrb[0].mxu0
      %v1539 = vpop.f32.mrb[0].mxu0
      %v1540 = vadd.f32 0.0, %v1539
      %v1541 = vpop.f32.mrb[0].mxu0
      %1542 = vdwg.mxu0
      %v1543 = vadd.f32 %v1389, %v1481
      %v1544 = vadd.f32 %v1390, %v1484
      %v1545 = vadd.f32 %v1391, %v1489
      %v1546 = vadd.f32 %v1392, %v1492
      %v1547 = vadd.f32 %v1393, %v1497
      %v1548 = vadd.f32 %v1394, %v1500
      %v1549 = vadd.f32 %v1395, %v1505
      %v1550 = vadd.f32 %v1396, %v1508
      %v1551 = vadd.f32 %v1397, %v1513
      %v1552 = vadd.f32 %v1398, %v1516
      %v1553 = vadd.f32 %v1399, %v1521
      %v1554 = vadd.f32 %v1400, %v1524
      %v1555 = vadd.f32 %v1401, %v1529
      %v1556 = vadd.f32 %v1402, %v1532
      %v1557 = vadd.f32 %v1403, %v1537
      %v1558 = vadd.f32 %v1404, %v1540
      %v1559 = vld [vmem:[%s911 + $0x8] sm:$0xff]
      %v1560 = vld [vmem:[%s911 + $0x10] sm:$0xff]
      %v1561 = vld [vmem:[%s911 + $0x18] sm:$0xff]
      %v1562 = vld [vmem:[%s911 + $0x20] sm:$0xff]
      %v1563 = vld [vmem:[%s911 + $0x28] sm:$0xff]
      %v1564 = vld [vmem:[%s911 + $0x30] sm:$0xff]
      %v1565 = vld [vmem:[%s911 + $0x38] sm:$0xff]
      %v1566 = vld [vmem:[%s911 + $0x40] sm:$0xff]
      %s1567 = scalar_lea.vmem %s3, 32
      %v1568 = vld [vmem:[%s1567] sm:$0xf]
      %v1569 = vld [vmem:[%s1567 + $0x4] sm:$0xf]
      %v1572 = vunpack.c.l.b16 %v1568
      %v1573 = vunpack.c.l.b16 %v1569
      %v1574 = vpack.c.b16 %v1573, %v1572
      %v1577 = vsel %vm419, %v1559, 0
      %v1580 = vsel %vm419, %v1560, 0
      %v1583 = vsel %vm419, %v1561, 0
      %v1586 = vsel %vm419, %v1562, 0
      %v1589 = vsel %vm419, %v1563, 0
      %v1592 = vsel %vm419, %v1564, 0
      %v1595 = vsel %vm419, %v1565, 0
      %v1598 = vsel %vm419, %v1566, 0
      %1600 = vmatprep.subr.bf16.mxu0 0
      %1601 = vmatpush1.bf16.msra.mxu0 %v1574
      %1602 = vmatprep.subr.bf16.mxu0 0
      %1603 = vmatpush1.bf16.msra.mxu0 0
      %1604 = vmatprep.subr.bf16.mxu0 0
      %1605 = vmatpush1.bf16.msra.mxu0 0
      %1606 = vmatprep.subr.bf16.mxu0 0
      %1607 = vmatpush1.bf16.msra.mxu0 0
      %1608 = vmatprep.subr.bf16.mxu0 0
      %1609 = vmatpush1.bf16.msra.mxu0 0
      %1610 = vmatprep.subr.bf16.mxu0 0
      %1611 = vmatpush1.bf16.msra.mxu0 0
      %1612 = vmatprep.subr.bf16.mxu0 0
      %1613 = vmatpush1.bf16.msra.mxu0 0
      %1614 = vmatprep.subr.bf16.mxu0 0
      %1615 = vmatpush1.bf16.msra.mxu0 0
      %1616 = vmatprep.subr.bf16.mxu0 0
      %1617 = vmatpush1.bf16.msra.mxu0 0
      %1618 = vmatprep.subr.bf16.mxu0 0
      %1619 = vmatpush1.bf16.msra.mxu0 0
      %1620 = vmatprep.subr.bf16.mxu0 0
      %1621 = vmatpush1.bf16.msra.mxu0 0
      %1622 = vmatprep.subr.bf16.mxu0 0
      %1623 = vmatpush1.bf16.msra.mxu0 0
      %1624 = vmatprep.subr.bf16.mxu0 0
      %1625 = vmatpush1.bf16.msra.mxu0 0
      %1626 = vmatprep.subr.bf16.mxu0 0
      %1627 = vmatpush1.bf16.msra.mxu0 0
      %1628 = vmatprep.subr.bf16.mxu0 0
      %1629 = vmatpush1.bf16.msra.mxu0 0
      %1630 = vmatprep.subr.bf16.mxu0 0
      %1631 = vmatpush1.bf16.msra.mxu0 0
      %1632 = vmatprep.mubr.bf16.mxu0 0
      %1633 = vmatmul.mubr.bf16.gmra.mrb[0].mxu0 %v1577
      %v1634 = vpop.f32.mrb[0].mxu0
      %v1635 = vadd.f32 0.0, %v1634
      %v1636 = vpop.f32.mrb[0].mxu0
      %v1637 = vpop.f32.mrb[0].mxu0
      %v1638 = vadd.f32 0.0, %v1637
      %v1639 = vpop.f32.mrb[0].mxu0
      %1640 = vmatprep.mubr.bf16.mxu0 0
      %1641 = vmatmul.mubr.bf16.gmra.mrb[0].mxu0 %v1580
      %v1642 = vpop.f32.mrb[0].mxu0
      %v1643 = vadd.f32 0.0, %v1642
      %v1644 = vpop.f32.mrb[0].mxu0
      %v1645 = vpop.f32.mrb[0].mxu0
      %v1646 = vadd.f32 0.0, %v1645
      %v1647 = vpop.f32.mrb[0].mxu0
      %1648 = vmatprep.mubr.bf16.mxu0 0
      %1649 = vmatmul.mubr.bf16.gmra.mrb[0].mxu0 %v1583
      %v1650 = vpop.f32.mrb[0].mxu0
      %v1651 = vadd.f32 0.0, %v1650
      %v1652 = vpop.f32.mrb[0].mxu0
      %v1653 = vpop.f32.mrb[0].mxu0
      %v1654 = vadd.f32 0.0, %v1653
      %v1655 = vpop.f32.mrb[0].mxu0
      %1656 = vmatprep.mubr.bf16.mxu0 0
      %1657 = vmatmul.mubr.bf16.gmra.mrb[0].mxu0 %v1586
      %v1658 = vpop.f32.mrb[0].mxu0
      %v1659 = vadd.f32 0.0, %v1658
      %v1660 = vpop.f32.mrb[0].mxu0
      %v1661 = vpop.f32.mrb[0].mxu0
      %v1662 = vadd.f32 0.0, %v1661
      %v1663 = vpop.f32.mrb[0].mxu0
      %1664 = vmatprep.mubr.bf16.mxu0 0
      %1665 = vmatmul.mubr.bf16.gmra.mrb[0].mxu0 %v1589
      %v1666 = vpop.f32.mrb[0].mxu0
      %v1667 = vadd.f32 0.0, %v1666
      %v1668 = vpop.f32.mrb[0].mxu0
      %v1669 = vpop.f32.mrb[0].mxu0
      %v1670 = vadd.f32 0.0, %v1669
      %v1671 = vpop.f32.mrb[0].mxu0
      %1672 = vmatprep.mubr.bf16.mxu0 0
      %1673 = vmatmul.mubr.bf16.gmra.mrb[0].mxu0 %v1592
      %v1674 = vpop.f32.mrb[0].mxu0
      %v1675 = vadd.f32 0.0, %v1674
      %v1676 = vpop.f32.mrb[0].mxu0
      %v1677 = vpop.f32.mrb[0].mxu0
      %v1678 = vadd.f32 0.0, %v1677
      %v1679 = vpop.f32.mrb[0].mxu0
      %1680 = vmatprep.mubr.bf16.mxu0 0
      %1681 = vmatmul.mubr.bf16.gmra.mrb[0].mxu0 %v1595
      %v1682 = vpop.f32.mrb[0].mxu0
      %v1683 = vadd.f32 0.0, %v1682
      %v1684 = vpop.f32.mrb[0].mxu0
      %v1685 = vpop.f32.mrb[0].mxu0
      %v1686 = vadd.f32 0.0, %v1685
      %v1687 = vpop.f32.mrb[0].mxu0
      %1688 = vmatprep.mubr.bf16.mxu0 0
      %1689 = vmatmul.mubr.bf16.gmra.mrb[0].mxu0 %v1598
      %v1690 = vpop.f32.mrb[0].mxu0
      %v1691 = vadd.f32 0.0, %v1690
      %v1692 = vpop.f32.mrb[0].mxu0
      %v1693 = vpop.f32.mrb[0].mxu0
      %v1694 = vadd.f32 0.0, %v1693
      %v1695 = vpop.f32.mrb[0].mxu0
      %1696 = vdwg.mxu0
      %v1697 = vadd.f32 %v1543, %v1635
      %v1698 = vadd.f32 %v1544, %v1638
      %v1699 = vadd.f32 %v1545, %v1643
      %v1700 = vadd.f32 %v1546, %v1646
      %v1701 = vadd.f32 %v1547, %v1651
      %v1702 = vadd.f32 %v1548, %v1654
      %v1703 = vadd.f32 %v1549, %v1659
      %v1704 = vadd.f32 %v1550, %v1662
      %v1705 = vadd.f32 %v1551, %v1667
      %v1706 = vadd.f32 %v1552, %v1670
      %v1707 = vadd.f32 %v1553, %v1675
      %v1708 = vadd.f32 %v1554, %v1678
      %v1709 = vadd.f32 %v1555, %v1683
      %v1710 = vadd.f32 %v1556, %v1686
      %v1711 = vadd.f32 %v1557, %v1691
      %v1712 = vadd.f32 %v1558, %v1694
      %v1713 = vld [vmem:[%s965 + $0x8] sm:$0xff]
      %v1714 = vld [vmem:[%s965 + $0x10] sm:$0xff]
      %v1715 = vld [vmem:[%s965 + $0x18] sm:$0xff]
      %v1716 = vld [vmem:[%s965 + $0x20] sm:$0xff]
      %v1717 = vld [vmem:[%s965 + $0x28] sm:$0xff]
      %v1718 = vld [vmem:[%s965 + $0x30] sm:$0xff]
      %v1719 = vld [vmem:[%s965 + $0x38] sm:$0xff]
      %v1720 = vld [vmem:[%s965 + $0x40] sm:$0xff]
      %s1721 = scalar_lea.vmem %s3, 40
      %v1722 = vld [vmem:[%s1721] sm:$0xf]
      %v1723 = vld [vmem:[%s1721 + $0x4] sm:$0xf]
      %v1726 = vunpack.c.l.b16 %v1722
      %v1727 = vunpack.c.l.b16 %v1723
      %v1728 = vpack.c.b16 %v1727, %v1726
      %v1731 = vsel %vm419, %v1713, 0
      %v1734 = vsel %vm419, %v1714, 0
      %v1737 = vsel %vm419, %v1715, 0
      %v1740 = vsel %vm419, %v1716, 0
      %v1743 = vsel %vm419, %v1717, 0
      %v1746 = vsel %vm419, %v1718, 0
      %v1749 = vsel %vm419, %v1719, 0
      %v1752 = vsel %vm419, %v1720, 0
      %1754 = vmatprep.subr.bf16.mxu0 0
      %1755 = vmatpush1.bf16.msra.mxu0 %v1728
      %1756 = vmatprep.subr.bf16.mxu0 0
      %1757 = vmatpush1.bf16.msra.mxu0 0
      %1758 = vmatprep.subr.bf16.mxu0 0
      %1759 = vmatpush1.bf16.msra.mxu0 0
      %1760 = vmatprep.subr.bf16.mxu0 0
      %1761 = vmatpush1.bf16.msra.mxu0 0
      %1762 = vmatprep.subr.bf16.mxu0 0
      %1763 = vmatpush1.bf16.msra.mxu0 0
      %1764 = vmatprep.subr.bf16.mxu0 0
      %1765 = vmatpush1.bf16.msra.mxu0 0
      %1766 = vmatprep.subr.bf16.mxu0 0
      %1767 = vmatpush1.bf16.msra.mxu0 0
      %1768 = vmatprep.subr.bf16.mxu0 0
      %1769 = vmatpush1.bf16.msra.mxu0 0
      %1770 = vmatprep.subr.bf16.mxu0 0
      %1771 = vmatpush1.bf16.msra.mxu0 0
      %1772 = vmatprep.subr.bf16.mxu0 0
      %1773 = vmatpush1.bf16.msra.mxu0 0
      %1774 = vmatprep.subr.bf16.mxu0 0
      %1775 = vmatpush1.bf16.msra.mxu0 0
      %1776 = vmatprep.subr.bf16.mxu0 0
      %1777 = vmatpush1.bf16.msra.mxu0 0
      %1778 = vmatprep.subr.bf16.mxu0 0
      %1779 = vmatpush1.bf16.msra.mxu0 0
      %1780 = vmatprep.subr.bf16.mxu0 0
      %1781 = vmatpush1.bf16.msra.mxu0 0
      %1782 = vmatprep.subr.bf16.mxu0 0
      %1783 = vmatpush1.bf16.msra.mxu0 0
      %1784 = vmatprep.subr.bf16.mxu0 0
      %1785 = vmatpush1.bf16.msra.mxu0 0
      %1786 = vmatprep.mubr.bf16.mxu0 0
      %1787 = vmatmul.mubr.bf16.gmra.mrb[0].mxu0 %v1731
      %v1788 = vpop.f32.mrb[0].mxu0
      %v1789 = vadd.f32 0.0, %v1788
      %v1790 = vpop.f32.mrb[0].mxu0
      %v1791 = vpop.f32.mrb[0].mxu0
      %v1792 = vadd.f32 0.0, %v1791
      %v1793 = vpop.f32.mrb[0].mxu0
      %1794 = vmatprep.mubr.bf16.mxu0 0
      %1795 = vmatmul.mubr.bf16.gmra.mrb[0].mxu0 %v1734
      %v1796 = vpop.f32.mrb[0].mxu0
      %v1797 = vadd.f32 0.0, %v1796
      %v1798 = vpop.f32.mrb[0].mxu0
      %v1799 = vpop.f32.mrb[0].mxu0
      %v1800 = vadd.f32 0.0, %v1799
      %v1801 = vpop.f32.mrb[0].mxu0
      %1802 = vmatprep.mubr.bf16.mxu0 0
      %1803 = vmatmul.mubr.bf16.gmra.mrb[0].mxu0 %v1737
      %v1804 = vpop.f32.mrb[0].mxu0
      %v1805 = vadd.f32 0.0, %v1804
      %v1806 = vpop.f32.mrb[0].mxu0
      %v1807 = vpop.f32.mrb[0].mxu0
      %v1808 = vadd.f32 0.0, %v1807
      %v1809 = vpop.f32.mrb[0].mxu0
      %1810 = vmatprep.mubr.bf16.mxu0 0
      %1811 = vmatmul.mubr.bf16.gmra.mrb[0].mxu0 %v1740
      %v1812 = vpop.f32.mrb[0].mxu0
      %v1813 = vadd.f32 0.0, %v1812
      %v1814 = vpop.f32.mrb[0].mxu0
      %v1815 = vpop.f32.mrb[0].mxu0
      %v1816 = vadd.f32 0.0, %v1815
      %v1817 = vpop.f32.mrb[0].mxu0
      %1818 = vmatprep.mubr.bf16.mxu0 0
      %1819 = vmatmul.mubr.bf16.gmra.mrb[0].mxu0 %v1743
      %v1820 = vpop.f32.mrb[0].mxu0
      %v1821 = vadd.f32 0.0, %v1820
      %v1822 = vpop.f32.mrb[0].mxu0
      %v1823 = vpop.f32.mrb[0].mxu0
      %v1824 = vadd.f32 0.0, %v1823
      %v1825 = vpop.f32.mrb[0].mxu0
      %1826 = vmatprep.mubr.bf16.mxu0 0
      %1827 = vmatmul.mubr.bf16.gmra.mrb[0].mxu0 %v1746
      %v1828 = vpop.f32.mrb[0].mxu0
      %v1829 = vadd.f32 0.0, %v1828
      %v1830 = vpop.f32.mrb[0].mxu0
      %v1831 = vpop.f32.mrb[0].mxu0
      %v1832 = vadd.f32 0.0, %v1831
      %v1833 = vpop.f32.mrb[0].mxu0
      %1834 = vmatprep.mubr.bf16.mxu0 0
      %1835 = vmatmul.mubr.bf16.gmra.mrb[0].mxu0 %v1749
      %v1836 = vpop.f32.mrb[0].mxu0
      %v1837 = vadd.f32 0.0, %v1836
      %v1838 = vpop.f32.mrb[0].mxu0
      %v1839 = vpop.f32.mrb[0].mxu0
      %v1840 = vadd.f32 0.0, %v1839
      %v1841 = vpop.f32.mrb[0].mxu0
      %1842 = vmatprep.mubr.bf16.mxu0 0
      %1843 = vmatmul.mubr.bf16.gmra.mrb[0].mxu0 %v1752
      %v1844 = vpop.f32.mrb[0].mxu0
      %v1845 = vadd.f32 0.0, %v1844
      %v1846 = vpop.f32.mrb[0].mxu0
      %v1847 = vpop.f32.mrb[0].mxu0
      %v1848 = vadd.f32 0.0, %v1847
      %v1849 = vpop.f32.mrb[0].mxu0
      %1850 = vdwg.mxu0
      %v1851 = vadd.f32 %v1697, %v1789
      %v1852 = vadd.f32 %v1698, %v1792
      %v1853 = vadd.f32 %v1699, %v1797
      %v1854 = vadd.f32 %v1700, %v1800
      %v1855 = vadd.f32 %v1701, %v1805
      %v1856 = vadd.f32 %v1702, %v1808
      %v1857 = vadd.f32 %v1703, %v1813
      %v1858 = vadd.f32 %v1704, %v1816
      %v1859 = vadd.f32 %v1705, %v1821
      %v1860 = vadd.f32 %v1706, %v1824
      %v1861 = vadd.f32 %v1707, %v1829
      %v1862 = vadd.f32 %v1708, %v1832
      %v1863 = vadd.f32 %v1709, %v1837
      %v1864 = vadd.f32 %v1710, %v1840
      %v1865 = vadd.f32 %v1711, %v1845
      %v1866 = vadd.f32 %v1712, %v1848
      %v1867 = vld [vmem:[#allocation2 + $0x10] sm:$0xff]
      %v1868 = vld [vmem:[#allocation2 + $0x18] sm:$0xff]
      %v1869 = vld [vmem:[#allocation2 + $0x20] sm:$0xff]
      %v1870 = vld [vmem:[#allocation2 + $0x28] sm:$0xff]
      %v1871 = vld [vmem:[#allocation2 + $0x30] sm:$0xff]
      %v1872 = vld [vmem:[#allocation2 + $0x38] sm:$0xff]
      %v1873 = vld [vmem:[#allocation2 + $0x40] sm:$0xff]
      %v1874 = vld [vmem:[#allocation2 + $0x48] sm:$0xff]
      %s1875 = scalar_lea.vmem %s3, 48
      %v1876 = vld [vmem:[%s1875] sm:$0xf]
      %v1877 = vld [vmem:[%s1875 + $0x4] sm:$0xf]
      %v1880 = vunpack.c.l.b16 %v1876
      %v1881 = vunpack.c.l.b16 %v1877
      %v1882 = vpack.c.b16 %v1881, %v1880
      %v1885 = vsel %vm419, %v1867, 0
      %v1888 = vsel %vm419, %v1868, 0
      %v1891 = vsel %vm419, %v1869, 0
      %v1894 = vsel %vm419, %v1870, 0
      %v1897 = vsel %vm419, %v1871, 0
      %v1900 = vsel %vm419, %v1872, 0
      %v1903 = vsel %vm419, %v1873, 0
      %v1906 = vsel %vm419, %v1874, 0
      %1908 = vmatprep.subr.bf16.mxu0 0
      %1909 = vmatpush1.bf16.msra.mxu0 %v1882
      %1910 = vmatprep.subr.bf16.mxu0 0
      %1911 = vmatpush1.bf16.msra.mxu0 0
      %1912 = vmatprep.subr.bf16.mxu0 0
      %1913 = vmatpush1.bf16.msra.mxu0 0
      %1914 = vmatprep.subr.bf16.mxu0 0
      %1915 = vmatpush1.bf16.msra.mxu0 0
      %1916 = vmatprep.subr.bf16.mxu0 0
      %1917 = vmatpush1.bf16.msra.mxu0 0
      %1918 = vmatprep.subr.bf16.mxu0 0
      %1919 = vmatpush1.bf16.msra.mxu0 0
      %1920 = vmatprep.subr.bf16.mxu0 0
      %1921 = vmatpush1.bf16.msra.mxu0 0
      %1922 = vmatprep.subr.bf16.mxu0 0
      %1923 = vmatpush1.bf16.msra.mxu0 0
      %1924 = vmatprep.subr.bf16.mxu0 0
      %1925 = vmatpush1.bf16.msra.mxu0 0
      %1926 = vmatprep.subr.bf16.mxu0 0
      %1927 = vmatpush1.bf16.msra.mxu0 0
      %1928 = vmatprep.subr.bf16.mxu0 0
      %1929 = vmatpush1.bf16.msra.mxu0 0
      %1930 = vmatprep.subr.bf16.mxu0 0
      %1931 = vmatpush1.bf16.msra.mxu0 0
      %1932 = vmatprep.subr.bf16.mxu0 0
      %1933 = vmatpush1.bf16.msra.mxu0 0
      %1934 = vmatprep.subr.bf16.mxu0 0
      %1935 = vmatpush1.bf16.msra.mxu0 0
      %1936 = vmatprep.subr.bf16.mxu0 0
      %1937 = vmatpush1.bf16.msra.mxu0 0
      %1938 = vmatprep.subr.bf16.mxu0 0
      %1939 = vmatpush1.bf16.msra.mxu0 0
      %1940 = vmatprep.mubr.bf16.mxu0 0
      %1941 = vmatmul.mubr.bf16.gmra.mrb[0].mxu0 %v1885
      %v1942 = vpop.f32.mrb[0].mxu0
      %v1943 = vadd.f32 0.0, %v1942
      %v1944 = vpop.f32.mrb[0].mxu0
      %v1945 = vpop.f32.mrb[0].mxu0
      %v1946 = vadd.f32 0.0, %v1945
      %v1947 = vpop.f32.mrb[0].mxu0
      %1948 = vmatprep.mubr.bf16.mxu0 0
      %1949 = vmatmul.mubr.bf16.gmra.mrb[0].mxu0 %v1888
      %v1950 = vpop.f32.mrb[0].mxu0
      %v1951 = vadd.f32 0.0, %v1950
      %v1952 = vpop.f32.mrb[0].mxu0
      %v1953 = vpop.f32.mrb[0].mxu0
      %v1954 = vadd.f32 0.0, %v1953
      %v1955 = vpop.f32.mrb[0].mxu0
      %1956 = vmatprep.mubr.bf16.mxu0 0
      %1957 = vmatmul.mubr.bf16.gmra.mrb[0].mxu0 %v1891
      %v1958 = vpop.f32.mrb[0].mxu0
      %v1959 = vadd.f32 0.0, %v1958
      %v1960 = vpop.f32.mrb[0].mxu0
      %v1961 = vpop.f32.mrb[0].mxu0
      %v1962 = vadd.f32 0.0, %v1961
      %v1963 = vpop.f32.mrb[0].mxu0
      %1964 = vmatprep.mubr.bf16.mxu0 0
      %1965 = vmatmul.mubr.bf16.gmra.mrb[0].mxu0 %v1894
      %v1966 = vpop.f32.mrb[0].mxu0
      %v1967 = vadd.f32 0.0, %v1966
      %v1968 = vpop.f32.mrb[0].mxu0
      %v1969 = vpop.f32.mrb[0].mxu0
      %v1970 = vadd.f32 0.0, %v1969
      %v1971 = vpop.f32.mrb[0].mxu0
      %1972 = vmatprep.mubr.bf16.mxu0 0
      %1973 = vmatmul.mubr.bf16.gmra.mrb[0].mxu0 %v1897
      %v1974 = vpop.f32.mrb[0].mxu0
      %v1975 = vadd.f32 0.0, %v1974
      %v1976 = vpop.f32.mrb[0].mxu0
      %v1977 = vpop.f32.mrb[0].mxu0
      %v1978 = vadd.f32 0.0, %v1977
      %v1979 = vpop.f32.mrb[0].mxu0
      %1980 = vmatprep.mubr.bf16.mxu0 0
      %1981 = vmatmul.mubr.bf16.gmra.mrb[0].mxu0 %v1900
      %v1982 = vpop.f32.mrb[0].mxu0
      %v1983 = vadd.f32 0.0, %v1982
      %v1984 = vpop.f32.mrb[0].mxu0
      %v1985 = vpop.f32.mrb[0].mxu0
      %v1986 = vadd.f32 0.0, %v1985
      %v1987 = vpop.f32.mrb[0].mxu0
      %1988 = vmatprep.mubr.bf16.mxu0 0
      %1989 = vmatmul.mubr.bf16.gmra.mrb[0].mxu0 %v1903
      %v1990 = vpop.f32.mrb[0].mxu0
      %v1991 = vadd.f32 0.0, %v1990
      %v1992 = vpop.f32.mrb[0].mxu0
      %v1993 = vpop.f32.mrb[0].mxu0
      %v1994 = vadd.f32 0.0, %v1993
      %v1995 = vpop.f32.mrb[0].mxu0
      %1996 = vmatprep.mubr.bf16.mxu0 0
      %1997 = vmatmul.mubr.bf16.gmra.mrb[0].mxu0 %v1906
      %v1998 = vpop.f32.mrb[0].mxu0
      %v1999 = vadd.f32 0.0, %v1998
      %v2000 = vpop.f32.mrb[0].mxu0
      %v2001 = vpop.f32.mrb[0].mxu0
      %v2002 = vadd.f32 0.0, %v2001
      %v2003 = vpop.f32.mrb[0].mxu0
      %2004 = vdwg.mxu0
      %v2005 = vadd.f32 %v1851, %v1943
      %v2006 = vadd.f32 %v1852, %v1946
      %v2007 = vadd.f32 %v1853, %v1951
      %v2008 = vadd.f32 %v1854, %v1954
      %v2009 = vadd.f32 %v1855, %v1959
      %v2010 = vadd.f32 %v1856, %v1962
      %v2011 = vadd.f32 %v1857, %v1967
      %v2012 = vadd.f32 %v1858, %v1970
      %v2013 = vadd.f32 %v1859, %v1975
      %v2014 = vadd.f32 %v1860, %v1978
      %v2015 = vadd.f32 %v1861, %v1983
      %v2016 = vadd.f32 %v1862, %v1986
      %v2017 = vadd.f32 %v1863, %v1991
      %v2018 = vadd.f32 %v1864, %v1994
      %v2019 = vadd.f32 %v1865, %v1999
      %v2020 = vadd.f32 %v1866, %v2002
      %v2021 = vld [vmem:[%s911 + $0x10] sm:$0xff]
      %v2022 = vld [vmem:[%s911 + $0x18] sm:$0xff]
      %v2023 = vld [vmem:[%s911 + $0x20] sm:$0xff]
      %v2024 = vld [vmem:[%s911 + $0x28] sm:$0xff]
      %v2025 = vld [vmem:[%s911 + $0x30] sm:$0xff]
      %v2026 = vld [vmem:[%s911 + $0x38] sm:$0xff]
      %v2027 = vld [vmem:[%s911 + $0x40] sm:$0xff]
      %v2028 = vld [vmem:[%s911 + $0x48] sm:$0xff]
      %s2029 = scalar_lea.vmem %s3, 56
      %v2030 = vld [vmem:[%s2029] sm:$0xf]
      %v2031 = vld [vmem:[%s2029 + $0x4] sm:$0xf]
      %v2034 = vunpack.c.l.b16 %v2030
      %v2035 = vunpack.c.l.b16 %v2031
      %v2036 = vpack.c.b16 %v2035, %v2034
      %v2039 = vsel %vm419, %v2021, 0
      %v2042 = vsel %vm419, %v2022, 0
      %v2045 = vsel %vm419, %v2023, 0
      %v2048 = vsel %vm419, %v2024, 0
      %v2051 = vsel %vm419, %v2025, 0
      %v2054 = vsel %vm419, %v2026, 0
      %v2057 = vsel %vm419, %v2027, 0
      %v2060 = vsel %vm419, %v2028, 0
      %2062 = vmatprep.subr.bf16.mxu0 0
      %2063 = vmatpush1.bf16.msra.mxu0 %v2036
      %2064 = vmatprep.subr.bf16.mxu0 0
      %2065 = vmatpush1.bf16.msra.mxu0 0
      %2066 = vmatprep.subr.bf16.mxu0 0
      %2067 = vmatpush1.bf16.msra.mxu0 0
      %2068 = vmatprep.subr.bf16.mxu0 0
      %2069 = vmatpush1.bf16.msra.mxu0 0
      %2070 = vmatprep.subr.bf16.mxu0 0
      %2071 = vmatpush1.bf16.msra.mxu0 0
      %2072 = vmatprep.subr.bf16.mxu0 0
      %2073 = vmatpush1.bf16.msra.mxu0 0
      %2074 = vmatprep.subr.bf16.mxu0 0
      %2075 = vmatpush1.bf16.msra.mxu0 0
      %2076 = vmatprep.subr.bf16.mxu0 0
      %2077 = vmatpush1.bf16.msra.mxu0 0
      %2078 = vmatprep.subr.bf16.mxu0 0
      %2079 = vmatpush1.bf16.msra.mxu0 0
      %2080 = vmatprep.subr.bf16.mxu0 0
      %2081 = vmatpush1.bf16.msra.mxu0 0
      %2082 = vmatprep.subr.bf16.mxu0 0
      %2083 = vmatpush1.bf16.msra.mxu0 0
      %2084 = vmatprep.subr.bf16.mxu0 0
      %2085 = vmatpush1.bf16.msra.mxu0 0
      %2086 = vmatprep.subr.bf16.mxu0 0
      %2087 = vmatpush1.bf16.msra.mxu0 0
      %2088 = vmatprep.subr.bf16.mxu0 0
      %2089 = vmatpush1.bf16.msra.mxu0 0
      %2090 = vmatprep.subr.bf16.mxu0 0
      %2091 = vmatpush1.bf16.msra.mxu0 0
      %2092 = vmatprep.subr.bf16.mxu0 0
      %2093 = vmatpush1.bf16.msra.mxu0 0
      %2094 = vmatprep.mubr.bf16.mxu0 0
      %2095 = vmatmul.mubr.bf16.gmra.mrb[0].mxu0 %v2039
      %v2096 = vpop.f32.mrb[0].mxu0
      %v2097 = vadd.f32 0.0, %v2096
      %v2098 = vpop.f32.mrb[0].mxu0
      %v2099 = vpop.f32.mrb[0].mxu0
      %v2100 = vadd.f32 0.0, %v2099
      %v2101 = vpop.f32.mrb[0].mxu0
      %2102 = vmatprep.mubr.bf16.mxu0 0
      %2103 = vmatmul.mubr.bf16.gmra.mrb[0].mxu0 %v2042
      %v2104 = vpop.f32.mrb[0].mxu0
      %v2105 = vadd.f32 0.0, %v2104
      %v2106 = vpop.f32.mrb[0].mxu0
      %v2107 = vpop.f32.mrb[0].mxu0
      %v2108 = vadd.f32 0.0, %v2107
      %v2109 = vpop.f32.mrb[0].mxu0
      %2110 = vmatprep.mubr.bf16.mxu0 0
      %2111 = vmatmul.mubr.bf16.gmra.mrb[0].mxu0 %v2045
      %v2112 = vpop.f32.mrb[0].mxu0
      %v2113 = vadd.f32 0.0, %v2112
      %v2114 = vpop.f32.mrb[0].mxu0
      %v2115 = vpop.f32.mrb[0].mxu0
      %v2116 = vadd.f32 0.0, %v2115
      %v2117 = vpop.f32.mrb[0].mxu0
      %2118 = vmatprep.mubr.bf16.mxu0 0
      %2119 = vmatmul.mubr.bf16.gmra.mrb[0].mxu0 %v2048
      %v2120 = vpop.f32.mrb[0].mxu0
      %v2121 = vadd.f32 0.0, %v2120
      %v2122 = vpop.f32.mrb[0].mxu0
      %v2123 = vpop.f32.mrb[0].mxu0
      %v2124 = vadd.f32 0.0, %v2123
      %v2125 = vpop.f32.mrb[0].mxu0
      %2126 = vmatprep.mubr.bf16.mxu0 0
      %2127 = vmatmul.mubr.bf16.gmra.mrb[0].mxu0 %v2051
      %v2128 = vpop.f32.mrb[0].mxu0
      %v2129 = vadd.f32 0.0, %v2128
      %v2130 = vpop.f32.mrb[0].mxu0
      %v2131 = vpop.f32.mrb[0].mxu0
      %v2132 = vadd.f32 0.0, %v2131
      %v2133 = vpop.f32.mrb[0].mxu0
      %2134 = vmatprep.mubr.bf16.mxu0 0
      %2135 = vmatmul.mubr.bf16.gmra.mrb[0].mxu0 %v2054
      %v2136 = vpop.f32.mrb[0].mxu0
      %v2137 = vadd.f32 0.0, %v2136
      %v2138 = vpop.f32.mrb[0].mxu0
      %v2139 = vpop.f32.mrb[0].mxu0
      %v2140 = vadd.f32 0.0, %v2139
      %v2141 = vpop.f32.mrb[0].mxu0
      %2142 = vmatprep.mubr.bf16.mxu0 0
      %2143 = vmatmul.mubr.bf16.gmra.mrb[0].mxu0 %v2057
      %v2144 = vpop.f32.mrb[0].mxu0
      %v2145 = vadd.f32 0.0, %v2144
      %v2146 = vpop.f32.mrb[0].mxu0
      %v2147 = vpop.f32.mrb[0].mxu0
      %v2148 = vadd.f32 0.0, %v2147
      %v2149 = vpop.f32.mrb[0].mxu0
      %2150 = vmatprep.mubr.bf16.mxu0 0
      %2151 = vmatmul.mubr.bf16.gmra.mrb[0].mxu0 %v2060
      %v2152 = vpop.f32.mrb[0].mxu0
      %v2153 = vadd.f32 0.0, %v2152
      %v2154 = vpop.f32.mrb[0].mxu0
      %v2155 = vpop.f32.mrb[0].mxu0
      %v2156 = vadd.f32 0.0, %v2155
      %v2157 = vpop.f32.mrb[0].mxu0
      %2158 = vdwg.mxu0
      %v2159 = vadd.f32 %v2005, %v2097
      %v2160 = vadd.f32 %v2006, %v2100
      %v2161 = vadd.f32 %v2007, %v2105
      %v2162 = vadd.f32 %v2008, %v2108
      %v2163 = vadd.f32 %v2009, %v2113
      %v2164 = vadd.f32 %v2010, %v2116
      %v2165 = vadd.f32 %v2011, %v2121
      %v2166 = vadd.f32 %v2012, %v2124
      %v2167 = vadd.f32 %v2013, %v2129
      %v2168 = vadd.f32 %v2014, %v2132
      %v2169 = vadd.f32 %v2015, %v2137
      %v2170 = vadd.f32 %v2016, %v2140
      %v2171 = vadd.f32 %v2017, %v2145
      %v2172 = vadd.f32 %v2018, %v2148
      %v2173 = vadd.f32 %v2019, %v2153
      %v2174 = vadd.f32 %v2020, %v2156
      %v2175 = vld [vmem:[%s965 + $0x10] sm:$0xff]
      %v2176 = vld [vmem:[%s965 + $0x18] sm:$0xff]
      %v2177 = vld [vmem:[%s965 + $0x20] sm:$0xff]
      %v2178 = vld [vmem:[%s965 + $0x28] sm:$0xff]
      %v2179 = vld [vmem:[%s965 + $0x30] sm:$0xff]
      %v2180 = vld [vmem:[%s965 + $0x38] sm:$0xff]
      %v2181 = vld [vmem:[%s965 + $0x40] sm:$0xff]
      %v2182 = vld [vmem:[%s965 + $0x48] sm:$0xff]
      %s2183 = scalar_lea.vmem %s3, 64
      %v2184 = vld [vmem:[%s2183] sm:$0xf]
      %v2185 = vld [vmem:[%s2183 + $0x4] sm:$0xf]
      %v2188 = vunpack.c.l.b16 %v2184
      %v2189 = vunpack.c.l.b16 %v2185
      %v2190 = vpack.c.b16 %v2189, %v2188
      %v2193 = vsel %vm419, %v2175, 0
      %v2196 = vsel %vm419, %v2176, 0
      %v2199 = vsel %vm419, %v2177, 0
      %v2202 = vsel %vm419, %v2178, 0
      %v2205 = vsel %vm419, %v2179, 0
      %v2208 = vsel %vm419, %v2180, 0
      %v2211 = vsel %vm419, %v2181, 0
      %v2214 = vsel %vm419, %v2182, 0
      %2216 = vmatprep.subr.bf16.mxu0 0
      %2217 = vmatpush1.bf16.msra.mxu0 %v2190
      %2218 = vmatprep.subr.bf16.mxu0 0
      %2219 = vmatpush1.bf16.msra.mxu0 0
      %2220 = vmatprep.subr.bf16.mxu0 0
      %2221 = vmatpush1.bf16.msra.mxu0 0
      %2222 = vmatprep.subr.bf16.mxu0 0
      %2223 = vmatpush1.bf16.msra.mxu0 0
      %2224 = vmatprep.subr.bf16.mxu0 0
      %2225 = vmatpush1.bf16.msra.mxu0 0
      %2226 = vmatprep.subr.bf16.mxu0 0
      %2227 = vmatpush1.bf16.msra.mxu0 0
      %2228 = vmatprep.subr.bf16.mxu0 0
      %2229 = vmatpush1.bf16.msra.mxu0 0
      %2230 = vmatprep.subr.bf16.mxu0 0
      %2231 = vmatpush1.bf16.msra.mxu0 0
      %2232 = vmatprep.subr.bf16.mxu0 0
      %2233 = vmatpush1.bf16.msra.mxu0 0
      %2234 = vmatprep.subr.bf16.mxu0 0
      %2235 = vmatpush1.bf16.msra.mxu0 0
      %2236 = vmatprep.subr.bf16.mxu0 0
      %2237 = vmatpush1.bf16.msra.mxu0 0
      %2238 = vmatprep.subr.bf16.mxu0 0
      %2239 = vmatpush1.bf16.msra.mxu0 0
      %2240 = vmatprep.subr.bf16.mxu0 0
      %2241 = vmatpush1.bf16.msra.mxu0 0
      %2242 = vmatprep.subr.bf16.mxu0 0
      %2243 = vmatpush1.bf16.msra.mxu0 0
      %2244 = vmatprep.subr.bf16.mxu0 0
      %2245 = vmatpush1.bf16.msra.mxu0 0
      %2246 = vmatprep.subr.bf16.mxu0 0
      %2247 = vmatpush1.bf16.msra.mxu0 0
      %2248 = vmatprep.mubr.bf16.mxu0 0
      %2249 = vmatmul.mubr.bf16.gmra.mrb[0].mxu0 %v2193
      %v2250 = vpop.f32.mrb[0].mxu0
      %v2251 = vadd.f32 0.0, %v2250
      %v2252 = vpop.f32.mrb[0].mxu0
      %v2253 = vpop.f32.mrb[0].mxu0
      %v2254 = vadd.f32 0.0, %v2253
      %v2255 = vpop.f32.mrb[0].mxu0
      %2256 = vmatprep.mubr.bf16.mxu0 0
      %2257 = vmatmul.mubr.bf16.gmra.mrb[0].mxu0 %v2196
      %v2258 = vpop.f32.mrb[0].mxu0
      %v2259 = vadd.f32 0.0, %v2258
      %v2260 = vpop.f32.mrb[0].mxu0
      %v2261 = vpop.f32.mrb[0].mxu0
      %v2262 = vadd.f32 0.0, %v2261
      %v2263 = vpop.f32.mrb[0].mxu0
      %2264 = vmatprep.mubr.bf16.mxu0 0
      %2265 = vmatmul.mubr.bf16.gmra.mrb[0].mxu0 %v2199
      %v2266 = vpop.f32.mrb[0].mxu0
      %v2267 = vadd.f32 0.0, %v2266
      %v2268 = vpop.f32.mrb[0].mxu0
      %v2269 = vpop.f32.mrb[0].mxu0
      %v2270 = vadd.f32 0.0, %v2269
      %v2271 = vpop.f32.mrb[0].mxu0
      %2272 = vmatprep.mubr.bf16.mxu0 0
      %2273 = vmatmul.mubr.bf16.gmra.mrb[0].mxu0 %v2202
      %v2274 = vpop.f32.mrb[0].mxu0
      %v2275 = vadd.f32 0.0, %v2274
      %v2276 = vpop.f32.mrb[0].mxu0
      %v2277 = vpop.f32.mrb[0].mxu0
      %v2278 = vadd.f32 0.0, %v2277
      %v2279 = vpop.f32.mrb[0].mxu0
      %2280 = vmatprep.mubr.bf16.mxu0 0
      %2281 = vmatmul.mubr.bf16.gmra.mrb[0].mxu0 %v2205
      %v2282 = vpop.f32.mrb[0].mxu0
      %v2283 = vadd.f32 0.0, %v2282
      %v2284 = vpop.f32.mrb[0].mxu0
      %v2285 = vpop.f32.mrb[0].mxu0
      %v2286 = vadd.f32 0.0, %v2285
      %v2287 = vpop.f32.mrb[0].mxu0
      %2288 = vmatprep.mubr.bf16.mxu0 0
      %2289 = vmatmul.mubr.bf16.gmra.mrb[0].mxu0 %v2208
      %v2290 = vpop.f32.mrb[0].mxu0
      %v2291 = vadd.f32 0.0, %v2290
      %v2292 = vpop.f32.mrb[0].mxu0
      %v2293 = vpop.f32.mrb[0].mxu0
      %v2294 = vadd.f32 0.0, %v2293
      %v2295 = vpop.f32.mrb[0].mxu0
      %2296 = vmatprep.mubr.bf16.mxu0 0
      %2297 = vmatmul.mubr.bf16.gmra.mrb[0].mxu0 %v2211
      %v2298 = vpop.f32.mrb[0].mxu0
      %v2299 = vadd.f32 0.0, %v2298
      %v2300 = vpop.f32.mrb[0].mxu0
      %v2301 = vpop.f32.mrb[0].mxu0
      %v2302 = vadd.f32 0.0, %v2301
      %v2303 = vpop.f32.mrb[0].mxu0
      %2304 = vmatprep.mubr.bf16.mxu0 0
      %2305 = vmatmul.mubr.bf16.gmra.mrb[0].mxu0 %v2214
      %v2306 = vpop.f32.mrb[0].mxu0
      %v2307 = vadd.f32 0.0, %v2306
      %v2308 = vpop.f32.mrb[0].mxu0
      %v2309 = vpop.f32.mrb[0].mxu0
      %v2310 = vadd.f32 0.0, %v2309
      %v2311 = vpop.f32.mrb[0].mxu0
      %2312 = vdwg.mxu0
      %v2313 = vadd.f32 %v2159, %v2251
      %v2314 = vadd.f32 %v2160, %v2254
      %v2315 = vadd.f32 %v2161, %v2259
      %v2316 = vadd.f32 %v2162, %v2262
      %v2317 = vadd.f32 %v2163, %v2267
      %v2318 = vadd.f32 %v2164, %v2270
      %v2319 = vadd.f32 %v2165, %v2275
      %v2320 = vadd.f32 %v2166, %v2278
      %v2321 = vadd.f32 %v2167, %v2283
      %v2322 = vadd.f32 %v2168, %v2286
      %v2323 = vadd.f32 %v2169, %v2291
      %v2324 = vadd.f32 %v2170, %v2294
      %v2325 = vadd.f32 %v2171, %v2299
      %v2326 = vadd.f32 %v2172, %v2302
      %v2327 = vadd.f32 %v2173, %v2307
      %v2328 = vadd.f32 %v2174, %v2310
      %v2329 = vld [vmem:[%s7] sm:$0x1]
      %v2331 = vlaneseq
      %v2332 = vshrl.u32 %v2331, 7
      %v2333 = vsub.s32 0, %v2332
      %v2334 = vrot.slane %v2329, %v2333
      %v2336 = vadd.f32 %v2313, %v2334
      %v2337 = vadd.f32 %v2314, %v2334
      %v2338 = vadd.f32 %v2315, %v2334
      %v2339 = vadd.f32 %v2316, %v2334
      %v2340 = vadd.f32 %v2317, %v2334
      %v2341 = vadd.f32 %v2318, %v2334
      %v2342 = vadd.f32 %v2319, %v2334
      %v2343 = vadd.f32 %v2320, %v2334
      %v2344 = vadd.f32 %v2321, %v2334
      %v2345 = vadd.f32 %v2322, %v2334
      %v2346 = vadd.f32 %v2323, %v2334
      %v2347 = vadd.f32 %v2324, %v2334
      %v2348 = vadd.f32 %v2325, %v2334
      %v2349 = vadd.f32 %v2326, %v2334
      %v2350 = vadd.f32 %v2327, %v2334
      %v2351 = vadd.f32 %v2328, %v2334
      %v2352 = vmax.f32 %v2336, 0.0
      %v2353 = vmax.f32 %v2337, 0.0
      %v2354 = vmax.f32 %v2338, 0.0
      %v2355 = vmax.f32 %v2339, 0.0
      %v2356 = vmax.f32 %v2340, 0.0
      %v2357 = vmax.f32 %v2341, 0.0
      %v2358 = vmax.f32 %v2342, 0.0
      %v2359 = vmax.f32 %v2343, 0.0
      %v2360 = vmax.f32 %v2344, 0.0
      %v2361 = vmax.f32 %v2345, 0.0
      %v2362 = vmax.f32 %v2346, 0.0
      %v2363 = vmax.f32 %v2347, 0.0
      %v2364 = vmax.f32 %v2348, 0.0
      %v2365 = vmax.f32 %v2349, 0.0
      %v2366 = vmax.f32 %v2350, 0.0
      %v2367 = vmax.f32 %v2351, 0.0
      %v2368 = vpack.c.bf16 %v2353, %v2352
      %v2369 = vpack.c.bf16 %v2355, %v2354
      %v2370 = vpack.c.bf16 %v2357, %v2356
      %v2371 = vpack.c.bf16 %v2359, %v2358
      %v2372 = vpack.c.bf16 %v2361, %v2360
      %v2373 = vpack.c.bf16 %v2363, %v2362
      %v2374 = vpack.c.bf16 %v2365, %v2364
      %v2375 = vpack.c.bf16 %v2367, %v2366
      %v2376 = vld [vmem:[%s4] sm:$0xf]
      %v2377 = vld [vmem:[%s4 + $0x4] sm:$0xf]
      %v2378 = vld [vmem:[%s8] sm:$0x1]
      %v2380 = vlaneseq
      %v2381 = vshrl.u32 %v2380, 7
      %v2382 = vsub.s32 0, %v2381
      %v2383 = vrot.slane %v2378, %v2382
      %v2387 = vunpack.c.l.b16 %v2376
      %v2388 = vunpack.c.l.b16 %v2377
      %v2389 = vpack.c.b16 %v2388, %v2387
      %v2392 = vsel %vm419, %v2368, 0
      %v2395 = vsel %vm419, %v2369, 0
      %v2398 = vsel %vm419, %v2370, 0
      %v2401 = vsel %vm419, %v2371, 0
      %v2404 = vsel %vm419, %v2372, 0
      %v2407 = vsel %vm419, %v2373, 0
      %v2410 = vsel %vm419, %v2374, 0
      %v2413 = vsel %vm419, %v2375, 0
      %2415 = vmatprep.subr.bf16.mxu0 0
      %2416 = vmatpush1.bf16.msra.mxu0 %v2389
      %2417 = vmatprep.subr.bf16.mxu0 0
      %2418 = vmatpush1.bf16.msra.mxu0 0
      %2419 = vmatprep.subr.bf16.mxu0 0
      %2420 = vmatpush1.bf16.msra.mxu0 0
      %2421 = vmatprep.subr.bf16.mxu0 0
      %2422 = vmatpush1.bf16.msra.mxu0 0
      %2423 = vmatprep.subr.bf16.mxu0 0
      %2424 = vmatpush1.bf16.msra.mxu0 0
      %2425 = vmatprep.subr.bf16.mxu0 0
      %2426 = vmatpush1.bf16.msra.mxu0 0
      %2427 = vmatprep.subr.bf16.mxu0 0
      %2428 = vmatpush1.bf16.msra.mxu0 0
      %2429 = vmatprep.subr.bf16.mxu0 0
      %2430 = vmatpush1.bf16.msra.mxu0 0
      %2431 = vmatprep.subr.bf16.mxu0 0
      %2432 = vmatpush1.bf16.msra.mxu0 0
      %2433 = vmatprep.subr.bf16.mxu0 0
      %2434 = vmatpush1.bf16.msra.mxu0 0
      %2435 = vmatprep.subr.bf16.mxu0 0
      %2436 = vmatpush1.bf16.msra.mxu0 0
      %2437 = vmatprep.subr.bf16.mxu0 0
      %2438 = vmatpush1.bf16.msra.mxu0 0
      %2439 = vmatprep.subr.bf16.mxu0 0
      %2440 = vmatpush1.bf16.msra.mxu0 0
      %2441 = vmatprep.subr.bf16.mxu0 0
      %2442 = vmatpush1.bf16.msra.mxu0 0
      %2443 = vmatprep.subr.bf16.mxu0 0
      %2444 = vmatpush1.bf16.msra.mxu0 0
      %2445 = vmatprep.subr.bf16.mxu0 0
      %2446 = vmatpush1.bf16.msra.mxu0 0
      %2447 = vmatprep.mubr.bf16.mxu0 0
      %2448 = vmatmul.mubr.bf16.gmra.mrb[0].mxu0 %v2392
      %v2449 = vpop.f32.mrb[0].mxu0
      %v2450 = vadd.f32 %v2383, %v2449
      %v2451 = vpop.f32.mrb[0].mxu0
      %v2452 = vpop.f32.mrb[0].mxu0
      %v2453 = vadd.f32 %v2383, %v2452
      %v2454 = vpop.f32.mrb[0].mxu0
      %2455 = vmatprep.mubr.bf16.mxu0 0
      %2456 = vmatmul.mubr.bf16.gmra.mrb[0].mxu0 %v2395
      %v2457 = vpop.f32.mrb[0].mxu0
      %v2458 = vadd.f32 %v2383, %v2457
      %v2459 = vpop.f32.mrb[0].mxu0
      %v2460 = vpop.f32.mrb[0].mxu0
      %v2461 = vadd.f32 %v2383, %v2460
      %v2462 = vpop.f32.mrb[0].mxu0
      %2463 = vmatprep.mubr.bf16.mxu0 0
      %2464 = vmatmul.mubr.bf16.gmra.mrb[0].mxu0 %v2398
      %v2465 = vpop.f32.mrb[0].mxu0
      %v2466 = vadd.f32 %v2383, %v2465
      %v2467 = vpop.f32.mrb[0].mxu0
      %v2468 = vpop.f32.mrb[0].mxu0
      %v2469 = vadd.f32 %v2383, %v2468
      %v2470 = vpop.f32.mrb[0].mxu0
      %2471 = vmatprep.mubr.bf16.mxu0 0
      %2472 = vmatmul.mubr.bf16.gmra.mrb[0].mxu0 %v2401
      %v2473 = vpop.f32.mrb[0].mxu0
      %v2474 = vadd.f32 %v2383, %v2473
      %v2475 = vpop.f32.mrb[0].mxu0
      %v2476 = vpop.f32.mrb[0].mxu0
      %v2477 = vadd.f32 %v2383, %v2476
      %v2478 = vpop.f32.mrb[0].mxu0
      %2479 = vmatprep.mubr.bf16.mxu0 0
      %2480 = vmatmul.mubr.bf16.gmra.mrb[0].mxu0 %v2404
      %v2481 = vpop.f32.mrb[0].mxu0
      %v2482 = vadd.f32 %v2383, %v2481
      %v2483 = vpop.f32.mrb[0].mxu0
      %v2484 = vpop.f32.mrb[0].mxu0
      %v2485 = vadd.f32 %v2383, %v2484
      %v2486 = vpop.f32.mrb[0].mxu0
      %2487 = vmatprep.mubr.bf16.mxu0 0
      %2488 = vmatmul.mubr.bf16.gmra.mrb[0].mxu0 %v2407
      %v2489 = vpop.f32.mrb[0].mxu0
      %v2490 = vadd.f32 %v2383, %v2489
      %v2491 = vpop.f32.mrb[0].mxu0
      %v2492 = vpop.f32.mrb[0].mxu0
      %v2493 = vadd.f32 %v2383, %v2492
      %v2494 = vpop.f32.mrb[0].mxu0
      %2495 = vmatprep.mubr.bf16.mxu0 0
      %2496 = vmatmul.mubr.bf16.gmra.mrb[0].mxu0 %v2410
      %v2497 = vpop.f32.mrb[0].mxu0
      %v2498 = vadd.f32 %v2383, %v2497
      %v2499 = vpop.f32.mrb[0].mxu0
      %v2500 = vpop.f32.mrb[0].mxu0
      %v2501 = vadd.f32 %v2383, %v2500
      %v2502 = vpop.f32.mrb[0].mxu0
      %2503 = vmatprep.mubr.bf16.mxu0 0
      %2504 = vmatmul.mubr.bf16.gmra.mrb[0].mxu0 %v2413
      %v2505 = vpop.f32.mrb[0].mxu0
      %v2506 = vadd.f32 %v2383, %v2505
      %v2507 = vpop.f32.mrb[0].mxu0
      %v2508 = vpop.f32.mrb[0].mxu0
      %v2509 = vadd.f32 %v2383, %v2508
      %v2510 = vpop.f32.mrb[0].mxu0
      %2511 = vdwg.mxu0
      %vm2529 = vcmask 1046528
      %v2530 = vrot.slane %v778, 1
      %v2531 = vrot.slane %v779, 1
      %v2532 = vsel %vm2529, %v2530, %v2531
      %v2533 = vrot.slane %v780, 1
      %v2534 = vsel %vm2529, %v2531, %v2533
      %v2535 = vrot.slane %v781, 1
      %v2536 = vsel %vm2529, %v2533, %v2535
      %v2537 = vrot.slane %v782, 1
      %v2538 = vsel %vm2529, %v2535, %v2537
      %v2539 = vrot.slane %v783, 1
      %v2540 = vsel %vm2529, %v2537, %v2539
      %v2541 = vrot.slane %v784, 1
      %v2542 = vsel %vm2529, %v2539, %v2541
      %v2543 = vrot.slane %v785, 1
      %v2544 = vsel %vm2529, %v2541, %v2543
      %v2545 = vrot.slane %v786, 1
      %v2546 = vsel %vm2529, %v2543, %v2545
      %v2547 = vrot.slane %v787, 1
      %v2548 = vsel %vm2529, %v2545, %v2547
      %v2549 = vrot.slane %v788, 1
      %v2550 = vsel %vm2529, %v2547, %v2549
      %v2551 = vrot.slane %v789, 1
      %v2552 = vsel %vm2529, %v2549, %v2551
      %v2553 = vrot.slane %v790, 1
      %v2554 = vsel %vm2529, %v2551, %v2553
      %v2555 = vrot.slane %v791, 1
      %v2556 = vsel %vm2529, %v2553, %v2555
      %v2557 = vrot.slane %v792, 1
      %v2558 = vsel %vm2529, %v2555, %v2557
      %v2559 = vrot.slane %v793, 1
      %v2560 = vsel %vm2529, %v2557, %v2559
      %v2561 = vrot.slane %v794, 1
      %v2562 = vsel %vm2529, %v2559, %v2561
      %2563 = vrot.lane.b32.xlu0 %v2532, 112
      %v2564 = vpop.permute.xlu0 %2563
      %2565 = vrot.lane.b32.xlu0 %v2534, 112
      %v2566 = vpop.permute.xlu0 %2565
      %2567 = vrot.lane.b32.xlu0 %v2536, 112
      %v2568 = vpop.permute.xlu0 %2567
      %2569 = vrot.lane.b32.xlu0 %v2538, 112
      %v2570 = vpop.permute.xlu0 %2569
      %2571 = vrot.lane.b32.xlu0 %v2540, 112
      %v2572 = vpop.permute.xlu0 %2571
      %2573 = vrot.lane.b32.xlu0 %v2542, 112
      %v2574 = vpop.permute.xlu0 %2573
      %2575 = vrot.lane.b32.xlu0 %v2544, 112
      %v2576 = vpop.permute.xlu0 %2575
      %2577 = vrot.lane.b32.xlu0 %v2546, 112
      %v2578 = vpop.permute.xlu0 %2577
      %2579 = vrot.lane.b32.xlu0 %v2548, 112
      %v2580 = vpop.permute.xlu0 %2579
      %2581 = vrot.lane.b32.xlu0 %v2550, 112
      %v2582 = vpop.permute.xlu0 %2581
      %2583 = vrot.lane.b32.xlu0 %v2552, 112
      %v2584 = vpop.permute.xlu0 %2583
      %2585 = vrot.lane.b32.xlu0 %v2554, 112
      %v2586 = vpop.permute.xlu0 %2585
      %2587 = vrot.lane.b32.xlu0 %v2556, 112
      %v2588 = vpop.permute.xlu0 %2587
      %2589 = vrot.lane.b32.xlu0 %v2558, 112
      %v2590 = vpop.permute.xlu0 %2589
      %2591 = vrot.lane.b32.xlu0 %v2560, 112
      %v2592 = vpop.permute.xlu0 %2591
      %2593 = vrot.lane.b32.xlu0 %v2562, 112
      %v2594 = vpop.permute.xlu0 %2593
      %v2611 = vadd.f32 %v2450, %v2564
      %v2612 = vadd.f32 %v2453, %v2566
      %v2613 = vadd.f32 %v2458, %v2568
      %v2614 = vadd.f32 %v2461, %v2570
      %v2615 = vadd.f32 %v2466, %v2572
      %v2616 = vadd.f32 %v2469, %v2574
      %v2617 = vadd.f32 %v2474, %v2576
      %v2618 = vadd.f32 %v2477, %v2578
      %v2619 = vadd.f32 %v2482, %v2580
      %v2620 = vadd.f32 %v2485, %v2582
      %v2621 = vadd.f32 %v2490, %v2584
      %v2622 = vadd.f32 %v2493, %v2586
      %v2623 = vadd.f32 %v2498, %v2588
      %v2624 = vadd.f32 %v2501, %v2590
      %v2625 = vadd.f32 %v2506, %v2592
      %v2626 = vadd.f32 %v2509, %v2594
      %v2627 = vmax.f32 %v2611, 0.0
      %v2628 = vmax.f32 %v2612, 0.0
      %v2629 = vmax.f32 %v2613, 0.0
      %v2630 = vmax.f32 %v2614, 0.0
      %v2631 = vmax.f32 %v2615, 0.0
      %v2632 = vmax.f32 %v2616, 0.0
      %v2633 = vmax.f32 %v2617, 0.0
      %v2634 = vmax.f32 %v2618, 0.0
      %v2635 = vmax.f32 %v2619, 0.0
      %v2636 = vmax.f32 %v2620, 0.0
      %v2637 = vmax.f32 %v2621, 0.0
      %v2638 = vmax.f32 %v2622, 0.0
      %v2639 = vmax.f32 %v2623, 0.0
      %v2640 = vmax.f32 %v2624, 0.0
      %v2641 = vmax.f32 %v2625, 0.0
      %v2642 = vmax.f32 %v2626, 0.0
      %2643 = vst.msk [vmem:[%s332] sm:$0xff] %vm419, %v2627
      %2644 = vst.msk [vmem:[%s332 + $0x8] sm:$0xff] %vm419, %v2628
      %2645 = vst.msk [vmem:[%s332 + $0x10] sm:$0xff] %vm419, %v2629
      %2646 = vst.msk [vmem:[%s332 + $0x18] sm:$0xff] %vm419, %v2630
      %2647 = vst.msk [vmem:[%s332 + $0x20] sm:$0xff] %vm419, %v2631
      %2648 = vst.msk [vmem:[%s332 + $0x28] sm:$0xff] %vm419, %v2632
      %2649 = vst.msk [vmem:[%s332 + $0x30] sm:$0xff] %vm419, %v2633
      %2650 = vst.msk [vmem:[%s332 + $0x38] sm:$0xff] %vm419, %v2634
      %2651 = vst.msk [vmem:[%s332 + $0x40] sm:$0xff] %vm419, %v2635
      %2652 = vst.msk [vmem:[%s332 + $0x48] sm:$0xff] %vm419, %v2636
      %2653 = vst.msk [vmem:[%s332 + $0x50] sm:$0xff] %vm419, %v2637
      %2654 = vst.msk [vmem:[%s332 + $0x58] sm:$0xff] %vm419, %v2638
      %2655 = vst.msk [vmem:[%s332 + $0x60] sm:$0xff] %vm419, %v2639
      %2656 = vst.msk [vmem:[%s332 + $0x68] sm:$0xff] %vm419, %v2640
      %2657 = vst.msk [vmem:[%s332 + $0x70] sm:$0xff] %vm419, %v2641
      %2658 = vst.msk [vmem:[%s332 + $0x78] sm:$0xff] %vm419, %v2642
      %p2659 = scmp.lt.s32.totalorder %s20, 1
      %s2660 = scalar_select %p2659, %s20, 1
      %s2661 = smul.addr %s2660, 16
      %s2662 = smul.addr %s2661, 8
      %s2663 = scalar_lea.vmem %s9, %s2662
      // Predicated region
      $region57: #{conv_block_2d.1} parent=55 // pred_check
        %p2664 = pneg %p232
      $region58: #{conv_block_2d.1} parent=55 // pred_check_branch
        %2666 = sbr.rel (%p2664) target = $region60
      $region59: #{conv_block_2d.1} parent=55 // pred_region
        _
      $region60: #{conv_block_2d.1} parent=55 // pred_fallthru
        _
    $region56: #{conv_block_2d.1} parent=5 // pred_fallthru
      _
    %p2667 = scmp.le.s32.totalorder 2, %s15
    // Predicated region
    $region61: #{conv_block_2d.1} parent=5 // pred_check
      %p2668 = pneg %p2667
    $region62: #{conv_block_2d.1} parent=5 // pred_check_branch
      %2670 = sbr.rel (%p2668) target = $region64
    $region63: #{conv_block_2d.1} parent=5 // pred_region
      %s2671 = ssub.s32 %s15, 2
      // Predicated region
      $region65: #{conv_block_2d.1} parent=63 // pred_check
        %p2672 = pneg %p238
      $region66: #{conv_block_2d.1} parent=63 // pred_check_branch
        %2674 = sbr.rel (%p2672) target = $region68
      $region67: #{conv_block_2d.1} parent=63 // pred_region
        %p2675 = scmp.lt.s32.totalorder %s21, 1
        %s2676 = scalar_select %p2675, %s21, 1
        %s2677 = smul.addr %s2676, 16
        %s2678 = smul.addr %s2677, 8
        %s2679 = scalar_lea.vmem %s9, %s2678
      $region68: #{conv_block_2d.1} parent=63 // pred_fallthru
        _
    $region64: #{conv_block_2d.1} parent=5 // pred_fallthru
      _
  $region6: #{conv_block_2d.1} parent=0 // loop_footer
    %s19 = sadd.s32 1, %s15
  $region7: #{conv_block_2d.1} parent=0 // loop_footer_branch
    %14 = sbr.rel target = $region3
  $region8: #{conv_block_2d.1} parent=0 // loop_exit
    _

</llo_original>
